<compile_context>
chip_gen: v6e
topology: v6e:2x2x1
jax: 0.10.0
libtpu: 0.0.40
codegen_flags: <defaults>
</compile_context>

<pallas_src>
import functools

import jax
import jax.numpy as jnp
from jax import lax
from jax.experimental import pallas as pl
from jax.experimental.pallas import tpu as pltpu

KH = KW = 3  # 3x3 conv / 3x3 max-pool, stride 1, pad 1


def _round_up(x, m):
    return (x + m - 1) // m * m


def ds_kernel(x_ref, m_ref, halo_ref, w_ref, h_ref, hm_ref, xflat_ref, pflat_ref,
              *, W, TH, pad_l, lf):
    # x_ref    : (1, in_ch, TH*W)    image tile, NCHW rows flattened onto lanes
    # m_ref    : (1, cm,    TH*W)    mask tile, same layout
    # halo_ref : (1, 1, 2*Cin, W)    [row above tile (Cin ch); row below tile (Cin ch)]
    #                                zeros at the image top/bottom edge
    # w_ref    : (9, Cout, Cin) bf16 conv weight, tap k = ky*3 + kx
    # h_ref    : (1, Cout, TH*W)     relu(conv(cat(x, mask)) * pooled_mask)
    # hm_ref   : (1, 1, TH*W)        3x3 max-pooled mask channel 0
    # xflat_ref: (Cin, lf) bf16      scratch: zero-padded row-flattened conv input
    # pflat_ref: (1,   lf) f32       scratch: -inf padded mask ch0 for the max pool
    in_ch = x_ref.shape[1]
    cm = m_ref.shape[1]
    cin = in_ch + cm
    cout = h_ref.shape[1]
    thw = TH * W
    L2 = (TH + 2) * W          # halo row + TH tile rows + halo row, flattened
    c0 = pad_l + W             # flat column of (tile row 0, col 0); multiple of 128
    t = pl.program_id(1)
    nt = pl.num_programs(1)
    f32 = jnp.float32
    cdt = xflat_ref.dtype      # bf16 MXU operand dtype

    hal = halo_ref[0, 0]                       # (2*Cin, W) f32
    above = hal[0:cin]                         # row above the tile (all conv channels)
    below = hal[cin:2 * cin]                   # row below the tile

    # ---- assemble the flat (Cin, L2) conv input in VMEM scratch (bf16) ----
    # Pads are rewritten every step: cheap (<=2*128 lanes/ch) and safe when the grid is
    # split across cores.  Only two pad elements are ever read (by the two extreme
    # taps) and they are zero, so garbage can never leak through the 0-weight edges.
    xflat_ref[:, 0:pad_l] = jnp.zeros((cin, pad_l), cdt)
    xflat_ref[:, pad_l + L2:lf] = jnp.zeros((cin, lf - pad_l - L2), cdt)
    xflat_ref[:, pad_l:c0] = above.astype(cdt)                       # halo row above
    xflat_ref[0:in_ch, c0:c0 + thw] = x_ref[0].astype(cdt)           # image channels
    xflat_ref[in_ch:cin, c0:c0 + thw] = m_ref[0].astype(cdt)         # mask channels
    xflat_ref[:, c0 + thw:pad_l + L2] = below.astype(cdt)            # halo row below

    # ---- 3x3 max-pool of mask channel 0 (separable, f32, -inf padding) ----
    pflat_ref[:, 0:pad_l] = jnp.full((1, pad_l), -jnp.inf, f32)
    pflat_ref[:, pad_l + L2:lf] = jnp.full((1, lf - pad_l - L2), -jnp.inf, f32)
    pflat_ref[:, pad_l:c0] = above[in_ch:in_ch + 1].astype(f32)
    pflat_ref[:, c0:c0 + thw] = m_ref[0, 0:1, :].astype(f32)
    pflat_ref[:, c0 + thw:pad_l + L2] = below[in_ch:in_ch + 1].astype(f32)

    # at the image top/bottom the halo rows must act as MaxPool2d padding (= -inf)
    @pl.when(t == 0)
    def _():
        pflat_ref[:, pad_l:c0] = jnp.full((1, W), -jnp.inf, f32)

    @pl.when(t == nt - 1)
    def _():
        pflat_ref[:, c0 + thw:pad_l + L2] = jnp.full((1, W), -jnp.inf, f32)

    # horizontal pass (fix row-wrap reads at w==0 / w==W-1), then vertical pass
    colf = lax.broadcasted_iota(jnp.int32, (1, L2), 1) % W
    mid = pflat_ref[:, pad_l:pad_l + L2]
    lft = pflat_ref[:, pad_l - 1:pad_l - 1 + L2]
    rgt = pflat_ref[:, pad_l + 1:pad_l + 1 + L2]
    hmax = jnp.maximum(mid,
                       jnp.maximum(jnp.where(colf == 0, -jnp.inf, lft),
                                   jnp.where(colf == W - 1, -jnp.inf, rgt)))
    pooled = jnp.maximum(hmax[:, 0:thw],
                         jnp.maximum(hmax[:, W:W + thw], hmax[:, 2 * W:2 * W + thw]))

    # ---- conv: 9 per-tap MXU matmuls accumulated in f32 (no im2col matrix) ----
    # Row-wrap reads for kx==0/kx==2 are fixed up once per kx group on the output.
    colc = lax.broadcasted_iota(jnp.int32, (1, thw), 1) % W
    nl = (colc != 0).astype(f32)        # output column has a valid left neighbour
    nr = (colc != W - 1).astype(f32)    # output column has a valid right neighbour

    acc = [None, None, None]            # one accumulator per kx group
    for ky in range(KH):
        for kx in range(KW):
            s = pad_l + ky * W + (kx - 1)                    # static flat shift
            blk = xflat_ref[:, s:s + thw]                    # (Cin, thw) bf16
            p = jnp.dot(w_ref[ky * KW + kx], blk,
                        preferred_element_type=jnp.float32)  # (Cout, thw) f32
            acc[kx] = p if acc[kx] is None else acc[kx] + p
    res = acc[1] + nl * acc[0] + nr * acc[2]                 # (Cout, thw) f32

    h = jnp.maximum(res * pooled, 0.0)                       # mask gate + ReLU (f32)
    h_ref[0] = h.astype(h_ref.dtype)
    hm_ref[0] = pooled.astype(hm_ref.dtype)


def _pick_row_tile(H, W, cin, cout):
    """Largest divisor of H whose flattened tile (TH*W lanes) is a multiple of 128 and
    fits a comfortable VMEM budget; falls back to the whole image (always legal)."""
    # rough per-output-lane VMEM bytes: 2x-buffered f32 in/out blocks, bf16 flat
    # scratch, f32 pool scratch, 3 accumulators + result + pool temporaries.
    per_lane = 4 * (2 * cin + 3 * (cout + 1)) + 2 * cin + 4 + 4 * (5 * cout + 6)
    max_lanes = max(512, min(32768, (24 << 20) // max(per_lane, 1)))
    best = None
    for th in range(1, H + 1):
        if H % th:
            continue
        lanes = th * W
        if lanes > max_lanes:
            break
        if lanes % 128 == 0:
            best = th
    return best if best is not None else H


def ds_forward(x_nchw, mask_nchw, weight_oihw, *, row_tile=None):
    """DSModule forward (defor=False, sample='none-3'): returns (h, h_mask) in NCHW."""
    B, in_ch, H, W = x_nchw.shape
    cm = mask_nchw.shape[1]
    Cout, Cin_w, kh, kw = weight_oihw.shape
    Cin = in_ch + cm
    assert (kh, kw) == (KH, KW) and Cin_w == Cin

    if row_tile is None:
        TH = _pick_row_tile(H, W, Cin, Cout)
    else:
        TH = int(row_tile)
        if H % TH != 0 or (TH != H and (TH * W) % 128 != 0):
            raise ValueError("row_tile must divide H and give a 128-lane-multiple "
                             "tile (or equal H)")
    T = H // TH
    HW, THW = H * W, TH * W
    out_dtype = x_nchw.dtype

    # Free reshapes only: NCHW already has W (hence H*W) on the minor axis.
    x2 = x_nchw.reshape(B, in_ch, HW)
    m2 = mask_nchw.reshape(B, cm, HW)

    # Per-tile halo rows (row above / below each row tile; zeros at the image edge).
    # Tiny side array: 2 * T * Cin * W elements per batch (~2/TH of the input).
    def edge_rows(a):  # (B, C, H, W) -> above, below: each (B, C, T, W)
        z = jnp.zeros(a.shape[:2] + (1, W), a.dtype)
        if T == 1:
            return z, z
        above = jnp.concatenate([z, a[:, :, TH - 1:H - TH:TH, :]], axis=2)
        below = jnp.concatenate([a[:, :, TH:H:TH, :], z], axis=2)
        return above, below

    ax, bx = edge_rows(x_nchw)
    am, bm = edge_rows(mask_nchw)
    above = jnp.concatenate([ax, am], axis=1)                 # (B, Cin, T, W)
    below = jnp.concatenate([bx, bm], axis=1)                 # (B, Cin, T, W)
    halo = jnp.concatenate([above, below], axis=1)            # (B, 2*Cin, T, W)
    halo = jnp.transpose(halo, (0, 2, 1, 3)).astype(jnp.float32)  # (B, T, 2*Cin, W)

    # (O, I, KH, KW) -> (KH*KW, O, I) bf16 so tap k = ky*KW + kx is w_ref[k].
    w9 = jnp.transpose(weight_oihw, (2, 3, 0, 1)).reshape(KH * KW, Cout, Cin)
    w9 = w9.astype(jnp.bfloat16)

    pad_l = _round_up(W + 1, 128) - W          # lane-aligns the bulk tile write
    L2 = (TH + 2) * W
    lf = _round_up(pad_l + L2 + 1, 128)        # flat padded scratch length

    kern = functools.partial(ds_kernel, W=W, TH=TH, pad_l=pad_l, lf=lf)

    # VMEM budget per grid step, including in-kernel temporaries; only raise the scoped
    # limit when needed and stay well under v7x's 64 MiB physical VMEM per TensorCore.
    fb = jnp.dtype(out_dtype).itemsize
    blk_in = 4 * (in_ch + cm) * THW + 4 * 2 * Cin * W + 2 * 9 * Cout * Cin
    blk_out = fb * (Cout + 1) * THW
    scratch = 2 * Cin * lf + 4 * lf
    interm = 4 * THW * (5 * Cout + 6) + 2 * Cin * THW
    vmem_need = 2 * (blk_in + blk_out) + scratch + interm + (2 << 20)
    vmem_limit = None if vmem_need <= (16 << 20) else int(min(vmem_need, 48 << 20))

    h2, hm2 = pl.pallas_call(
        kern,
        out_shape=(jax.ShapeDtypeStruct((B, Cout, HW), out_dtype),
                   jax.ShapeDtypeStruct((B, 1, HW), out_dtype)),
        grid_spec=pltpu.PrefetchScalarGridSpec(
            num_scalar_prefetch=0,
            grid=(B, T),
            in_specs=[
                pl.BlockSpec((1, in_ch, THW), lambda b, t: (b, 0, t)),
                pl.BlockSpec((1, cm, THW), lambda b, t: (b, 0, t)),
                pl.BlockSpec((1, 1, 2 * Cin, W), lambda b, t: (b, t, 0, 0)),
                pl.BlockSpec((KH * KW, Cout, Cin), lambda b, t: (0, 0, 0)),
            ],
            out_specs=[
                pl.BlockSpec((1, Cout, THW), lambda b, t: (b, 0, t)),
                pl.BlockSpec((1, 1, THW), lambda b, t: (b, 0, t)),
            ],
            scratch_shapes=[
                pltpu.VMEM((Cin, lf), jnp.bfloat16),   # flat conv input (MXU operand)
                pltpu.VMEM((1, lf), jnp.float32),      # flat mask ch0 for the pool
            ]),
        compiler_params=pltpu.CompilerParams(
            dimension_semantics=("parallel", "parallel"),
            vmem_limit_bytes=vmem_limit),
    )(x2, m2, halo, w9)

    # Free reshapes back to NCHW.
    return h2.reshape(B, Cout, H, W), hm2.reshape(B, 1, H, W)


def ds_forward_reference(x_nchw, mask_nchw, weight_oihw):
    """Pure-JAX reference mirroring the PyTorch else-branch (NCHW, f32)."""
    conv_in = jnp.concatenate([x_nchw, mask_nchw], axis=1)
    h = lax.conv_general_dilated(
        conv_in, weight_oihw, window_strides=(1, 1),
        padding=((1, 1), (1, 1)),
        dimension_numbers=('NCHW', 'OIHW', 'NCHW'))
    hm = lax.reduce_window(
        mask_nchw[:, :1], -jnp.inf, lax.max,
        window_dimensions=(1, 1, 3, 3), window_strides=(1, 1, 1, 1),
        padding=((0, 0), (0, 0), (1, 1), (1, 1)))
    h = jnp.maximum(h * hm, 0.0)
    return h, hm


if __name__ == "__main__":
    B, in_ch, out_ch, H, W = 2, 4, 4, 16, 16
    Cin = in_ch + 2  # 'none-3': mask has 2 channels, conv sees in_ch+2

    key = jax.random.PRNGKey(0)
    kx, km, kw = jax.random.split(key, 3)

    # Round test inputs/weights to bf16 so the kernel's bf16 MXU operands are exact and
    # the comparison against the f32 reference stays tight.
    x = jax.random.normal(kx, (B, in_ch, H, W), dtype=jnp.float32)
    x = x.astype(jnp.bfloat16).astype(jnp.float32)
    mask = jax.random.bernoulli(km, 0.7, (B, 2, H, W)).astype(jnp.float32)
    weight = 0.1 * jax.random.normal(kw, (out_ch, Cin, KH, KW), dtype=jnp.float32)
    weight = weight.astype(jnp.bfloat16).astype(jnp.float32)

    h_ref, hm_ref = ds_forward_reference(x, mask, weight)

    # row_tile=8 exercises the multi-tile halo path (T=2); None uses the adaptive tile.
    for rt in (8, None):
        h, h_mask = ds_forward(x, mask, weight, row_tile=rt)
        jax.block_until_ready((h, h_mask))
        assert h.shape == (B, out_ch, H, W) and h_mask.shape == (B, 1, H, W)
        assert jnp.allclose(h, h_ref, atol=1e-3, rtol=1e-3), f"h mismatch (row_tile={rt})"
        assert jnp.allclose(h_mask, hm_ref, atol=1e-6), f"h_mask mismatch (row_tile={rt})"

    print("KERNEL_OK")
</pallas_src>

<mosaic_0001>
module attributes {stable_mosaic.version = 11 : i64} {
  func.func @ds_kernel(%arg0: i32, %arg1: i32, %arg2: memref<1x4x128xf32, #tpu.memory_space<vmem>>, %arg3: memref<1x2x128xf32, #tpu.memory_space<vmem>>, %arg4: memref<1x1x12x16xf32, #tpu.memory_space<vmem>>, %arg5: memref<9x4x6xbf16, #tpu.memory_space<vmem>>, %arg6: memref<1x4x128xf32, #tpu.memory_space<vmem>>, %arg7: memref<1x1x128xf32, #tpu.memory_space<vmem>>, %arg8: memref<6x384xbf16, #tpu.memory_space<vmem>>, %arg9: memref<1x384xf32, #tpu.memory_space<vmem>>) attributes {dimension_semantics = [#tpu.dimension_semantics<parallel>, #tpu.dimension_semantics<parallel>], iteration_bounds = array<i64: 2, 2>, scalar_prefetch = 0 : i64, scratch_operands = 2 : i64, tpu.core_type = #tpu.core_type<tc>, window_params = [{transform_indices = @transform_0, window_bounds = array<i64: 1, 4, 128>}, {transform_indices = @transform_1, window_bounds = array<i64: 1, 2, 128>}, {transform_indices = @transform_2, window_bounds = array<i64: 1, 1, 12, 16>}, {pipeline_mode = #tpu.pipeline_mode<synchronous>, transform_indices = @transform_3, window_bounds = array<i64: 9, 4, 6>}, {transform_indices = @transform_4, window_bounds = array<i64: 1, 4, 128>}, {transform_indices = @transform_5, window_bounds = array<i64: 1, 1, 128>}]} {
    %c0 = arith.constant 0 : index
    %c0_0 = arith.constant 0 : index
    %c0_1 = arith.constant 0 : index
    %c0_2 = arith.constant 0 : index
    %0 = vector.load %arg4[%c0, %c0_0, %c0_1, %c0_2] : memref<1x1x12x16xf32, #tpu.memory_space<vmem>>, vector<1x1x12x16xf32>
    %1 = vector.shape_cast %0 : vector<1x1x12x16xf32> to vector<12x16xf32>
    %2 = vector.extract_strided_slice %1 {offsets = [0, 0], sizes = [6, 16], strides = [1, 1]} : vector<12x16xf32> to vector<6x16xf32>
    %3 = vector.extract_strided_slice %1 {offsets = [6, 0], sizes = [6, 16], strides = [1, 1]} : vector<12x16xf32> to vector<6x16xf32>
    %cst = arith.constant 0.000000e+00 : bf16
    %4 = vector.broadcast %cst : bf16 to vector<6x112xbf16>
    %c0_3 = arith.constant 0 : index
    %c0_4 = arith.constant 0 : index
    %5 = vector.load %arg8[%c0_3, %c0_4] : memref<6x384xbf16, #tpu.memory_space<vmem>>, vector<6x112xbf16>
    tpu.vector_store %arg8[%c0_3, %c0_4], %4 {strides = array<i32>} : memref<6x384xbf16, #tpu.memory_space<vmem>>, vector<6x112xbf16>,
    %cst_5 = arith.constant 0.000000e+00 : bf16
    %6 = vector.broadcast %cst_5 : bf16 to vector<6x112xbf16>
    %c0_6 = arith.constant 0 : index
    %c272 = arith.constant 272 : index
    %7 = vector.load %arg8[%c0_6, %c272] : memref<6x384xbf16, #tpu.memory_space<vmem>>, vector<6x112xbf16>
    tpu.vector_store %arg8[%c0_6, %c272], %6 {strides = array<i32>} : memref<6x384xbf16, #tpu.memory_space<vmem>>, vector<6x112xbf16>,
    %8 = arith.truncf %2 : vector<6x16xf32> to vector<6x16xbf16>
    %c0_7 = arith.constant 0 : index
    %c112 = arith.constant 112 : index
    %9 = vector.load %arg8[%c0_7, %c112] : memref<6x384xbf16, #tpu.memory_space<vmem>>, vector<6x16xbf16>
    tpu.vector_store %arg8[%c0_7, %c112], %8 {strides = array<i32>} : memref<6x384xbf16, #tpu.memory_space<vmem>>, vector<6x16xbf16>,
    %c0_8 = arith.constant 0 : index
    %c0_9 = arith.constant 0 : index
    %c0_10 = arith.constant 0 : index
    %10 = vector.load %arg2[%c0_8, %c0_9, %c0_10] : memref<1x4x128xf32, #tpu.memory_space<vmem>>, vector<1x4x128xf32>
    %11 = vector.shape_cast %10 : vector<1x4x128xf32> to vector<4x128xf32>
    %12 = arith.truncf %11 : vector<4x128xf32> to vector<4x128xbf16>
    %c0_11 = arith.constant 0 : index
    %c128 = arith.constant 128 : index
    %13 = vector.load %arg8[%c0_11, %c128] : memref<6x384xbf16, #tpu.memory_space<vmem>>, vector<4x128xbf16>
    tpu.vector_store %arg8[%c0_11, %c128], %12 {strides = array<i32>} : memref<6x384xbf16, #tpu.memory_space<vmem>>, vector<4x128xbf16>,
    %c0_12 = arith.constant 0 : index
    %c0_13 = arith.constant 0 : index
    %c0_14 = arith.constant 0 : index
    %14 = vector.load %arg3[%c0_12, %c0_13, %c0_14] : memref<1x2x128xf32, #tpu.memory_space<vmem>>, vector<1x2x128xf32>
    %15 = vector.shape_cast %14 : vector<1x2x128xf32> to vector<2x128xf32>
    %16 = arith.truncf %15 : vector<2x128xf32> to vector<2x128xbf16>
    %c4 = arith.constant 4 : index
    %c128_15 = arith.constant 128 : index
    %17 = vector.load %arg8[%c4, %c128_15] : memref<6x384xbf16, #tpu.memory_space<vmem>>, vector<2x128xbf16>
    tpu.vector_store %arg8[%c4, %c128_15], %16 {strides = array<i32>} : memref<6x384xbf16, #tpu.memory_space<vmem>>, vector<2x128xbf16>,
    %18 = arith.truncf %3 : vector<6x16xf32> to vector<6x16xbf16>
    %c0_16 = arith.constant 0 : index
    %c256 = arith.constant 256 : index
    %19 = vector.load %arg8[%c0_16, %c256] : memref<6x384xbf16, #tpu.memory_space<vmem>>, vector<6x16xbf16>
    tpu.vector_store %arg8[%c0_16, %c256], %18 {strides = array<i32>} : memref<6x384xbf16, #tpu.memory_space<vmem>>, vector<6x16xbf16>,
    %cst_17 = arith.constant 0xFF800000 : f32
    %20 = vector.broadcast %cst_17 : f32 to vector<1x112xf32>
    %c0_18 = arith.constant 0 : index
    %c0_19 = arith.constant 0 : index
    %21 = vector.load %arg9[%c0_18, %c0_19] : memref<1x384xf32, #tpu.memory_space<vmem>>, vector<1x112xf32>
    tpu.vector_store %arg9[%c0_18, %c0_19], %20 {strides = array<i32>} : memref<1x384xf32, #tpu.memory_space<vmem>>, vector<1x112xf32>,
    %cst_20 = arith.constant 0xFF800000 : f32
    %22 = vector.broadcast %cst_20 : f32 to vector<1x112xf32>
    %c0_21 = arith.constant 0 : index
    %c272_22 = arith.constant 272 : index
    %23 = vector.load %arg9[%c0_21, %c272_22] : memref<1x384xf32, #tpu.memory_space<vmem>>, vector<1x112xf32>
    tpu.vector_store %arg9[%c0_21, %c272_22], %22 {strides = array<i32>} : memref<1x384xf32, #tpu.memory_space<vmem>>, vector<1x112xf32>,
    %24 = vector.extract_strided_slice %2 {offsets = [4, 0], sizes = [1, 16], strides = [1, 1]} : vector<6x16xf32> to vector<1x16xf32>
    %c0_23 = arith.constant 0 : index
    %c112_24 = arith.constant 112 : index
    %25 = vector.load %arg9[%c0_23, %c112_24] : memref<1x384xf32, #tpu.memory_space<vmem>>, vector<1x16xf32>
    tpu.vector_store %arg9[%c0_23, %c112_24], %24 {strides = array<i32>} : memref<1x384xf32, #tpu.memory_space<vmem>>, vector<1x16xf32>,
    %c0_25 = arith.constant 0 : index
    %c0_26 = arith.constant 0 : index
    %c0_27 = arith.constant 0 : index
    %26 = vector.load %arg3[%c0_25, %c0_26, %c0_27] : memref<1x2x128xf32, #tpu.memory_space<vmem>>, vector<1x1x128xf32>
    %27 = vector.shape_cast %26 : vector<1x1x128xf32> to vector<1x128xf32>
    %c0_28 = arith.constant 0 : index
    %c128_29 = arith.constant 128 : index
    %28 = vector.load %arg9[%c0_28, %c128_29] : memref<1x384xf32, #tpu.memory_space<vmem>>, vector<1x128xf32>
    tpu.vector_store %arg9[%c0_28, %c128_29], %27 {strides = array<i32>} : memref<1x384xf32, #tpu.memory_space<vmem>>, vector<1x128xf32>,
    %29 = vector.extract_strided_slice %3 {offsets = [4, 0], sizes = [1, 16], strides = [1, 1]} : vector<6x16xf32> to vector<1x16xf32>
    %c0_30 = arith.constant 0 : index
    %c256_31 = arith.constant 256 : index
    %30 = vector.load %arg9[%c0_30, %c256_31] : memref<1x384xf32, #tpu.memory_space<vmem>>, vector<1x16xf32>
    tpu.vector_store %arg9[%c0_30, %c256_31], %29 {strides = array<i32>} : memref<1x384xf32, #tpu.memory_space<vmem>>, vector<1x16xf32>,
    %c0_i32 = arith.constant 0 : i32
    %31 = arith.cmpi eq, %arg1, %c0_i32 : i32
    %32 = arith.extui %31 : i1 to i32
    %c0_i32_32 = arith.constant 0 : i32
    %33 = arith.cmpi ne, %32, %c0_i32_32 : i32
    scf.if %33 {
      %cst_103 = arith.constant 0xFF800000 : f32
      %155 = vector.broadcast %cst_103 : f32 to vector<1x16xf32>
      %c0_104 = arith.constant 0 : index
      %c112_105 = arith.constant 112 : index
      %156 = vector.load %arg9[%c0_104, %c112_105] : memref<1x384xf32, #tpu.memory_space<vmem>>, vector<1x16xf32>
      tpu.vector_store %arg9[%c0_104, %c112_105], %155 {strides = array<i32>} : memref<1x384xf32, #tpu.memory_space<vmem>>, vector<1x16xf32>,
    } else {
    }
    %c1_i32 = arith.constant 1 : i32
    %34 = arith.cmpi eq, %arg1, %c1_i32 : i32
    %35 = arith.extui %34 : i1 to i32
    %c0_i32_33 = arith.constant 0 : i32
    %36 = arith.cmpi ne, %35, %c0_i32_33 : i32
    scf.if %36 {
      %cst_103 = arith.constant 0xFF800000 : f32
      %155 = vector.broadcast %cst_103 : f32 to vector<1x16xf32>
      %c0_104 = arith.constant 0 : index
      %c256_105 = arith.constant 256 : index
      %156 = vector.load %arg9[%c0_104, %c256_105] : memref<1x384xf32, #tpu.memory_space<vmem>>, vector<1x16xf32>
      tpu.vector_store %arg9[%c0_104, %c256_105], %155 {strides = array<i32>} : memref<1x384xf32, #tpu.memory_space<vmem>>, vector<1x16xf32>,
    } else {
    }
    %37 = tpu.iota {dimensions = array<i32: 1>} : vector<1x160xi32>
    %c16_i32 = arith.constant 16 : i32
    %c0_i32_34 = arith.constant 0 : i32
    %38 = arith.cmpi eq, %c16_i32, %c0_i32_34 : i32
    %c1_i32_35 = arith.constant 1 : i32
    %39 = arith.select %38, %c1_i32_35, %c16_i32 : i32
    %40 = vector.broadcast %39 : i32 to vector<1x160xi32>
    %41 = arith.remsi %37, %40 : vector<1x160xi32>
    %c0_i32_36 = arith.constant 0 : i32
    %42 = vector.broadcast %c0_i32_36 : i32 to vector<1x160xi32>
    %43 = arith.cmpi ne, %41, %42 : vector<1x160xi32>
    %c0_i32_37 = arith.constant 0 : i32
    %44 = vector.broadcast %c0_i32_37 : i32 to vector<1x160xi32>
    %45 = arith.cmpi slt, %41, %44 : vector<1x160xi32>
    %c0_i32_38 = arith.constant 0 : i32
    %46 = arith.cmpi slt, %39, %c0_i32_38 : i32
    %47 = vector.broadcast %46 : i1 to vector<1x160xi1>
    %48 = vector.broadcast %47 : vector<1x160xi1> to vector<1x160xi1>
    %49 = arith.xori %45, %48 : vector<1x160xi1>
    %50 = arith.andi %49, %43 : vector<1x160xi1>
    %51 = vector.broadcast %39 : i32 to vector<1x160xi32>
    %52 = arith.addi %41, %51 : vector<1x160xi32>
    %53 = arith.select %50, %52, %41 : vector<1x160xi1>, vector<1x160xi32>
    %c0_39 = arith.constant 0 : index
    %c112_40 = arith.constant 112 : index
    %54 = vector.load %arg9[%c0_39, %c112_40] : memref<1x384xf32, #tpu.memory_space<vmem>>, vector<1x160xf32>
    %c0_41 = arith.constant 0 : index
    %c111 = arith.constant 111 : index
    %55 = vector.load %arg9[%c0_41, %c111] : memref<1x384xf32, #tpu.memory_space<vmem>>, vector<1x160xf32>
    %c0_42 = arith.constant 0 : index
    %c113 = arith.constant 113 : index
    %56 = vector.load %arg9[%c0_42, %c113] : memref<1x384xf32, #tpu.memory_space<vmem>>, vector<1x160xf32>
    %c0_i32_43 = arith.constant 0 : i32
    %57 = vector.broadcast %c0_i32_43 : i32 to vector<1x160xi32>
    %58 = arith.cmpi eq, %53, %57 : vector<1x160xi32>
    %cst_44 = arith.constant 0xFF800000 : f32
    %59 = vector.broadcast %cst_44 : f32 to vector<1x160xf32>
    %60 = arith.select %58, %59, %55 : vector<1x160xi1>, vector<1x160xf32>
    %c15_i32 = arith.constant 15 : i32
    %61 = vector.broadcast %c15_i32 : i32 to vector<1x160xi32>
    %62 = arith.cmpi eq, %53, %61 : vector<1x160xi32>
    %cst_45 = arith.constant 0xFF800000 : f32
    %63 = vector.broadcast %cst_45 : f32 to vector<1x160xf32>
    %64 = arith.select %62, %63, %56 : vector<1x160xi1>, vector<1x160xf32>
    %65 = arith.maximumf %60, %64 : vector<1x160xf32>
    %66 = arith.maximumf %54, %65 : vector<1x160xf32>
    %67 = vector.extract_strided_slice %66 {offsets = [0, 0], sizes = [1, 128], strides = [1, 1]} : vector<1x160xf32> to vector<1x128xf32>
    %68 = vector.extract_strided_slice %66 {offsets = [0, 16], sizes = [1, 128], strides = [1, 1]} : vector<1x160xf32> to vector<1x128xf32>
    %69 = vector.extract_strided_slice %66 {offsets = [0, 32], sizes = [1, 128], strides = [1, 1]} : vector<1x160xf32> to vector<1x128xf32>
    %70 = arith.maximumf %68, %69 : vector<1x128xf32>
    %71 = arith.maximumf %67, %70 : vector<1x128xf32>
    %72 = tpu.iota {dimensions = array<i32: 1>} : vector<1x128xi32>
    %c16_i32_46 = arith.constant 16 : i32
    %c0_i32_47 = arith.constant 0 : i32
    %73 = arith.cmpi eq, %c16_i32_46, %c0_i32_47 : i32
    %c1_i32_48 = arith.constant 1 : i32
    %74 = arith.select %73, %c1_i32_48, %c16_i32_46 : i32
    %75 = vector.broadcast %74 : i32 to vector<1x128xi32>
    %76 = arith.remsi %72, %75 : vector<1x128xi32>
    %c0_i32_49 = arith.constant 0 : i32
    %77 = vector.broadcast %c0_i32_49 : i32 to vector<1x128xi32>
    %78 = arith.cmpi ne, %76, %77 : vector<1x128xi32>
    %c0_i32_50 = arith.constant 0 : i32
    %79 = vector.broadcast %c0_i32_50 : i32 to vector<1x128xi32>
    %80 = arith.cmpi slt, %76, %79 : vector<1x128xi32>
    %c0_i32_51 = arith.constant 0 : i32
    %81 = arith.cmpi slt, %74, %c0_i32_51 : i32
    %82 = vector.broadcast %81 : i1 to vector<1x128xi1>
    %83 = vector.broadcast %82 : vector<1x128xi1> to vector<1x128xi1>
    %84 = arith.xori %80, %83 : vector<1x128xi1>
    %85 = arith.andi %84, %78 : vector<1x128xi1>
    %86 = vector.broadcast %74 : i32 to vector<1x128xi32>
    %87 = arith.addi %76, %86 : vector<1x128xi32>
    %88 = arith.select %85, %87, %76 : vector<1x128xi1>, vector<1x128xi32>
    %c0_i32_52 = arith.constant 0 : i32
    %89 = vector.broadcast %c0_i32_52 : i32 to vector<1x128xi32>
    %90 = arith.cmpi ne, %88, %89 : vector<1x128xi32>
    %91 = arith.extui %90 : vector<1x128xi1> to vector<1x128xi32>
    %92 = arith.sitofp %91 : vector<1x128xi32> to vector<1x128xf32>
    %c15_i32_53 = arith.constant 15 : i32
    %93 = vector.broadcast %c15_i32_53 : i32 to vector<1x128xi32>
    %94 = arith.cmpi ne, %88, %93 : vector<1x128xi32>
    %95 = arith.extui %94 : vector<1x128xi1> to vector<1x128xi32>
    %96 = arith.sitofp %95 : vector<1x128xi32> to vector<1x128xf32>
    %c0_54 = arith.constant 0 : index
    %c111_55 = arith.constant 111 : index
    %97 = vector.load %arg8[%c0_54, %c111_55] : memref<6x384xbf16, #tpu.memory_space<vmem>>, vector<6x128xbf16>
    %c0_56 = arith.constant 0 : index
    %c0_57 = arith.constant 0 : index
    %c0_58 = arith.constant 0 : index
    %98 = vector.load %arg5[%c0_56, %c0_57, %c0_58] : memref<9x4x6xbf16, #tpu.memory_space<vmem>>, vector<1x4x6xbf16>
    %99 = vector.shape_cast %98 : vector<1x4x6xbf16> to vector<4x6xbf16>
    %cst_59 = arith.constant dense<0.000000e+00> : vector<4x128xf32>
    %100 = tpu.matmul %99, %97, %cst_59 {dimension_numbers = #tpu.dot_dimension_numbers<[1], [0], [0], [1], [0, 0, 1, 1], [], []>} : vector<4x6xbf16>, vector<6x128xbf16>, vector<4x128xf32> -> vector<4x128xf32>
    %c0_60 = arith.constant 0 : index
    %c112_61 = arith.constant 112 : index
    %101 = vector.load %arg8[%c0_60, %c112_61] : memref<6x384xbf16, #tpu.memory_space<vmem>>, vector<6x128xbf16>
    %c1 = arith.constant 1 : index
    %c0_62 = arith.constant 0 : index
    %c0_63 = arith.constant 0 : index
    %102 = vector.load %arg5[%c1, %c0_62, %c0_63] : memref<9x4x6xbf16, #tpu.memory_space<vmem>>, vector<1x4x6xbf16>
    %103 = vector.shape_cast %102 : vector<1x4x6xbf16> to vector<4x6xbf16>
    %cst_64 = arith.constant dense<0.000000e+00> : vector<4x128xf32>
    %104 = tpu.matmul %103, %101, %cst_64 {dimension_numbers = #tpu.dot_dimension_numbers<[1], [0], [0], [1], [0, 0, 1, 1], [], []>} : vector<4x6xbf16>, vector<6x128xbf16>, vector<4x128xf32> -> vector<4x128xf32>
    %c0_65 = arith.constant 0 : index
    %c113_66 = arith.constant 113 : index
    %105 = vector.load %arg8[%c0_65, %c113_66] : memref<6x384xbf16, #tpu.memory_space<vmem>>, vector<6x128xbf16>
    %c2 = arith.constant 2 : index
    %c0_67 = arith.constant 0 : index
    %c0_68 = arith.constant 0 : index
    %106 = vector.load %arg5[%c2, %c0_67, %c0_68] : memref<9x4x6xbf16, #tpu.memory_space<vmem>>, vector<1x4x6xbf16>
    %107 = vector.shape_cast %106 : vector<1x4x6xbf16> to vector<4x6xbf16>
    %cst_69 = arith.constant dense<0.000000e+00> : vector<4x128xf32>
    %108 = tpu.matmul %107, %105, %cst_69 {dimension_numbers = #tpu.dot_dimension_numbers<[1], [0], [0], [1], [0, 0, 1, 1], [], []>} : vector<4x6xbf16>, vector<6x128xbf16>, vector<4x128xf32> -> vector<4x128xf32>
    %c0_70 = arith.constant 0 : index
    %c127 = arith.constant 127 : index
    %109 = vector.load %arg8[%c0_70, %c127] : memref<6x384xbf16, #tpu.memory_space<vmem>>, vector<6x128xbf16>
    %c3 = arith.constant 3 : index
    %c0_71 = arith.constant 0 : index
    %c0_72 = arith.constant 0 : index
    %110 = vector.load %arg5[%c3, %c0_71, %c0_72] : memref<9x4x6xbf16, #tpu.memory_space<vmem>>, vector<1x4x6xbf16>
    %111 = vector.shape_cast %110 : vector<1x4x6xbf16> to vector<4x6xbf16>
    %cst_73 = arith.constant dense<0.000000e+00> : vector<4x128xf32>
    %112 = tpu.matmul %111, %109, %cst_73 {dimension_numbers = #tpu.dot_dimension_numbers<[1], [0], [0], [1], [0, 0, 1, 1], [], []>} : vector<4x6xbf16>, vector<6x128xbf16>, vector<4x128xf32> -> vector<4x128xf32>
    %113 = arith.addf %100, %112 : vector<4x128xf32>
    %c0_74 = arith.constant 0 : index
    %c128_75 = arith.constant 128 : index
    %114 = vector.load %arg8[%c0_74, %c128_75] : memref<6x384xbf16, #tpu.memory_space<vmem>>, vector<6x128xbf16>
    %c4_76 = arith.constant 4 : index
    %c0_77 = arith.constant 0 : index
    %c0_78 = arith.constant 0 : index
    %115 = vector.load %arg5[%c4_76, %c0_77, %c0_78] : memref<9x4x6xbf16, #tpu.memory_space<vmem>>, vector<1x4x6xbf16>
    %116 = vector.shape_cast %115 : vector<1x4x6xbf16> to vector<4x6xbf16>
    %cst_79 = arith.constant dense<0.000000e+00> : vector<4x128xf32>
    %117 = tpu.matmul %116, %114, %cst_79 {dimension_numbers = #tpu.dot_dimension_numbers<[1], [0], [0], [1], [0, 0, 1, 1], [], []>} : vector<4x6xbf16>, vector<6x128xbf16>, vector<4x128xf32> -> vector<4x128xf32>
    %118 = arith.addf %104, %117 : vector<4x128xf32>
    %c0_80 = arith.constant 0 : index
    %c129 = arith.constant 129 : index
    %119 = vector.load %arg8[%c0_80, %c129] : memref<6x384xbf16, #tpu.memory_space<vmem>>, vector<6x128xbf16>
    %c5 = arith.constant 5 : index
    %c0_81 = arith.constant 0 : index
    %c0_82 = arith.constant 0 : index
    %120 = vector.load %arg5[%c5, %c0_81, %c0_82] : memref<9x4x6xbf16, #tpu.memory_space<vmem>>, vector<1x4x6xbf16>
    %121 = vector.shape_cast %120 : vector<1x4x6xbf16> to vector<4x6xbf16>
    %cst_83 = arith.constant dense<0.000000e+00> : vector<4x128xf32>
    %122 = tpu.matmul %121, %119, %cst_83 {dimension_numbers = #tpu.dot_dimension_numbers<[1], [0], [0], [1], [0, 0, 1, 1], [], []>} : vector<4x6xbf16>, vector<6x128xbf16>, vector<4x128xf32> -> vector<4x128xf32>
    %123 = arith.addf %108, %122 : vector<4x128xf32>
    %c0_84 = arith.constant 0 : index
    %c143 = arith.constant 143 : index
    %124 = vector.load %arg8[%c0_84, %c143] : memref<6x384xbf16, #tpu.memory_space<vmem>>, vector<6x128xbf16>
    %c6 = arith.constant 6 : index
    %c0_85 = arith.constant 0 : index
    %c0_86 = arith.constant 0 : index
    %125 = vector.load %arg5[%c6, %c0_85, %c0_86] : memref<9x4x6xbf16, #tpu.memory_space<vmem>>, vector<1x4x6xbf16>
    %126 = vector.shape_cast %125 : vector<1x4x6xbf16> to vector<4x6xbf16>
    %cst_87 = arith.constant dense<0.000000e+00> : vector<4x128xf32>
    %127 = tpu.matmul %126, %124, %cst_87 {dimension_numbers = #tpu.dot_dimension_numbers<[1], [0], [0], [1], [0, 0, 1, 1], [], []>} : vector<4x6xbf16>, vector<6x128xbf16>, vector<4x128xf32> -> vector<4x128xf32>
    %128 = arith.addf %113, %127 : vector<4x128xf32>
    %c0_88 = arith.constant 0 : index
    %c144 = arith.constant 144 : index
    %129 = vector.load %arg8[%c0_88, %c144] : memref<6x384xbf16, #tpu.memory_space<vmem>>, vector<6x128xbf16>
    %c7 = arith.constant 7 : index
    %c0_89 = arith.constant 0 : index
    %c0_90 = arith.constant 0 : index
    %130 = vector.load %arg5[%c7, %c0_89, %c0_90] : memref<9x4x6xbf16, #tpu.memory_space<vmem>>, vector<1x4x6xbf16>
    %131 = vector.shape_cast %130 : vector<1x4x6xbf16> to vector<4x6xbf16>
    %cst_91 = arith.constant dense<0.000000e+00> : vector<4x128xf32>
    %132 = tpu.matmul %131, %129, %cst_91 {dimension_numbers = #tpu.dot_dimension_numbers<[1], [0], [0], [1], [0, 0, 1, 1], [], []>} : vector<4x6xbf16>, vector<6x128xbf16>, vector<4x128xf32> -> vector<4x128xf32>
    %133 = arith.addf %118, %132 : vector<4x128xf32>
    %c0_92 = arith.constant 0 : index
    %c145 = arith.constant 145 : index
    %134 = vector.load %arg8[%c0_92, %c145] : memref<6x384xbf16, #tpu.memory_space<vmem>>, vector<6x128xbf16>
    %c8 = arith.constant 8 : index
    %c0_93 = arith.constant 0 : index
    %c0_94 = arith.constant 0 : index
    %135 = vector.load %arg5[%c8, %c0_93, %c0_94] : memref<9x4x6xbf16, #tpu.memory_space<vmem>>, vector<1x4x6xbf16>
    %136 = vector.shape_cast %135 : vector<1x4x6xbf16> to vector<4x6xbf16>
    %cst_95 = arith.constant dense<0.000000e+00> : vector<4x128xf32>
    %137 = tpu.matmul %136, %134, %cst_95 {dimension_numbers = #tpu.dot_dimension_numbers<[1], [0], [0], [1], [0, 0, 1, 1], [], []>} : vector<4x6xbf16>, vector<6x128xbf16>, vector<4x128xf32> -> vector<4x128xf32>
    %138 = arith.addf %123, %137 : vector<4x128xf32>
    %139 = vector.broadcast %92 : vector<1x128xf32> to vector<4x128xf32>
    %140 = arith.mulf %139, %128 : vector<4x128xf32>
    %141 = arith.addf %133, %140 : vector<4x128xf32>
    %142 = vector.broadcast %96 : vector<1x128xf32> to vector<4x128xf32>
    %143 = arith.mulf %142, %138 : vector<4x128xf32>
    %144 = arith.addf %141, %143 : vector<4x128xf32>
    %145 = vector.broadcast %71 : vector<1x128xf32> to vector<4x128xf32>
    %146 = arith.mulf %144, %145 : vector<4x128xf32>
    %cst_96 = arith.constant 0.000000e+00 : f32
    %147 = vector.broadcast %cst_96 : f32 to vector<4x128xf32>
    %148 = arith.maximumf %146, %147 : vector<4x128xf32>
    %c0_97 = arith.constant 0 : index
    %c0_98 = arith.constant 0 : index
    %c0_99 = arith.constant 0 : index
    %149 = vector.load %arg6[%c0_97, %c0_98, %c0_99] : memref<1x4x128xf32, #tpu.memory_space<vmem>>, vector<1x4x128xf32>
    %150 = vector.shape_cast %149 : vector<1x4x128xf32> to vector<4x128xf32>
    %151 = vector.shape_cast %148 : vector<4x128xf32> to vector<1x4x128xf32>
    tpu.vector_store %arg6[%c0_97, %c0_98, %c0_99], %151 {strides = array<i32>} : memref<1x4x128xf32, #tpu.memory_space<vmem>>, vector<1x4x128xf32>,
    %c0_100 = arith.constant 0 : index
    %c0_101 = arith.constant 0 : index
    %c0_102 = arith.constant 0 : index
    %152 = vector.load %arg7[%c0_100, %c0_101, %c0_102] : memref<1x1x128xf32, #tpu.memory_space<vmem>>, vector<1x1x128xf32>
    %153 = vector.shape_cast %152 : vector<1x1x128xf32> to vector<1x128xf32>
    %154 = vector.shape_cast %71 : vector<1x128xf32> to vector<1x1x128xf32>
    tpu.vector_store %arg7[%c0_100, %c0_101, %c0_102], %154 {strides = array<i32>} : memref<1x1x128xf32, #tpu.memory_space<vmem>>, vector<1x1x128xf32>,
    return
  }
  func.func @transform_0(%arg0: i32, %arg1: i32) -> (i32, i32, i32) {
    %c0_i32 = arith.constant 0 : i32
    %c0_i32_0 = arith.constant 0 : i32
    return %arg0, %c0_i32, %arg1 : i32, i32, i32
  }
  func.func @transform_1(%arg0: i32, %arg1: i32) -> (i32, i32, i32) {
    %c0_i32 = arith.constant 0 : i32
    %c0_i32_0 = arith.constant 0 : i32
    return %arg0, %c0_i32, %arg1 : i32, i32, i32
  }
  func.func @transform_2(%arg0: i32, %arg1: i32) -> (i32, i32, i32, i32) {
    %c0_i32 = arith.constant 0 : i32
    %c0_i32_0 = arith.constant 0 : i32
    %c0_i32_1 = arith.constant 0 : i32
    return %arg0, %arg1, %c0_i32, %c0_i32_0 : i32, i32, i32, i32
  }
  func.func @transform_3(%arg0: i32, %arg1: i32) -> (i32, i32, i32) {
    %c0_i32 = arith.constant 0 : i32
    %c0_i32_0 = arith.constant 0 : i32
    %c0_i32_1 = arith.constant 0 : i32
    %c0_i32_2 = arith.constant 0 : i32
    return %c0_i32, %c0_i32_0, %c0_i32_1 : i32, i32, i32
  }
  func.func @transform_4(%arg0: i32, %arg1: i32) -> (i32, i32, i32) {
    %c0_i32 = arith.constant 0 : i32
    %c0_i32_0 = arith.constant 0 : i32
    return %arg0, %c0_i32, %arg1 : i32, i32, i32
  }
  func.func @transform_5(%arg0: i32, %arg1: i32) -> (i32, i32, i32) {
    %c0_i32 = arith.constant 0 : i32
    %c0_i32_0 = arith.constant 0 : i32
    return %arg0, %c0_i32, %arg1 : i32, i32, i32
  }
}

</mosaic_0001>

<llo_original>
// kernel: tpu_custom_call.1
$region0: #{tpu_custom_call.1}
  #allocation0 [shape = 'u32[]', space=smem, size = 0x4, offset = 0x4, fixed_abs, tag = 'smem constant byte address 0x4 - core index']
  #allocation1 [shape = 'u32[144,128]{1,0:T(1,128)}', space=vmem, size = 0x12000, scoped, tag = 'internal scratch']
  #allocation2 [shape = 'bf16[6,384]{1,0:T(8,128)(2,1)}', space=vmem, size = 0x1800, scoped, tag = 'scratch operand']
  #allocation3 [shape = 'f32[1,384]{1,0:T(1,128)}', space=vmem, size = 0x600, scoped, tag = 'scratch operand']
  %s0 = inlined_call_operand.vmem [shape: f32[2,4,256], index: 0, kind: input, shape index: {}]
  %s1 = inlined_call_operand.vmem [shape: f32[2,2,256], index: 1, kind: input, shape index: {}]
  %s2 = inlined_call_operand.vmem [shape: f32[2,2,12,16], index: 2, kind: input, shape index: {}]
  %s3 = inlined_call_operand.vmem [shape: bf16[9,4,6], index: 3, kind: input, shape index: {}]
  %s4 = inlined_call_operand.hbm [shape: f32[2,4,256], index: 4, kind: output, shape index: {0}]
  %s5 = inlined_call_operand.hbm [shape: f32[2,1,256], index: 5, kind: output, shape index: {1}]
  %6 = xla_tuple %s4, %s5
  %s7 = sld [smem:[#allocation0]]
  $region65: #{tpu_custom_call.1} parent=0
    _
  %s9 = ssub.s32 1, %s7
  %s10 = scalar_select 0, %s9, %s7
  $region1: #{tpu_custom_call.1} parent=0
    #allocation4 [shape = 'u8[4096]{0}', space=vmem, size = 0x1000, scoped, tag = 'output window, operand 0']
    #allocation5 [shape = 's32[2]{0}', space=sflag, size = 0x8, scoped, tag = 'scoped memory for tpu_custom_call.1']
    #allocation6 [shape = 'u8[1024]{0}', space=vmem, size = 0x400, scoped, tag = 'output window, operand 1']
    #allocation7 [shape = 's32[2]{0}', space=sflag, size = 0x8, scoped, tag = 'scoped memory for tpu_custom_call.1']
    %11 = vsyncpa [#allocation5], 0
    %s12 = scalar_lea.sflag [#allocation5], 1
    %13 = vsyncpa %s12, 0
    %14 = vsyncpa [#allocation7], 0
    %s15 = scalar_lea.sflag [#allocation7], 1
    %16 = vsyncpa %s15, 0
    loop: start=0, step=1, limit=6
    $region2: #{tpu_custom_call.1} parent=1 // loop_pre_header
      _
    $region3: #{tpu_custom_call.1} parent=1 // loop_header
      %s18 = sphi 0, %s22
      %p19 = scmp.ge.s32.totalorder %s18, 6
      %s25 = sphi 0, %s37
      %s26 = sphi 0, %s33
      %s27 = sphi 0, %s25
      %s28 = sphi 0, %s26
      %s29 = sphi 0, %s27
      %s30 = sphi 0, %s28
      %s42 = sphi 0, %s44
      %s45 = sphi 0, %s42
      %s46 = sphi 0, %s45
      %s62 = sphi 0, %s46
      %s70 = sphi 0, %s72
      %s73 = sphi 0, %s70
      %s74 = sphi 0, %s73
      %s90 = sphi 0, %s74
      %s98 = sphi 0, %s100
      %s101 = sphi 0, %s98
      %s102 = sphi 0, %s101
      %s118 = sphi 0, %s102
      %s122 = sphi 0, %s122
      %s124 = sphi 0, %s122
      %s125 = sphi 0, %s124
      %s139 = sphi 0, %s125
      %s147 = sphi 0, %s149
      %s150 = sphi 0, %s147
      %s151 = sphi 0, %s150
      %s167 = sphi 0, %s151
      %s175 = sphi 0, %s177
      %s178 = sphi 0, %s175
      %s179 = sphi 0, %s178
      %s195 = sphi 0, %s179
    $region4: #{tpu_custom_call.1} parent=1 // loop_header_branch
      %21 = sbr.rel (%p19) target = $region8
    $region5: #{tpu_custom_call.1} parent=1 // loop_body
      %s23 = ssub.s32 %s18, 1
      %s24 = ssub.s32 %s18, 2
      %s31 = sadd.s32 1, %s26
      %p32 = scmp.ge.s32.totalorder %s31, 2
      %s33 = scalar_select %p32, 0, %s31
      %s34 = sadd.s32 1, %s25
      %s35 = scalar_select %p32, %s34, %s25
      %p36 = scmp.ge.s32.totalorder %s35, 2
      %s37 = scalar_select %p36, 0, %s35
      %s38 = ssub.s32 %s25, %s37
      %s39 = ssub.s32 %s26, %s33
      %s40 = sor.u32 %s38, %s39
      %p41 = scmp.eq.s32.totalorder %s40, 0
      %s43 = sadd.s32 %s42, 1
      %s44 = scalar_select %p41, %s42, %s43
      %p47 = pneg %p41
      %p48 = scmp.eq.s32.totalorder %s18, 3
      %p49 = por %p47, %p48
      %p50 = scmp.ne.s32.totalorder %s42, %s45
      %p51 = scmp.eq.s32.totalorder %s18, 0
      %p52 = por %p50, %p51
      %p53 = scmp.ne.s32.totalorder %s42, %s45
      %p54 = scmp.eq.s32.totalorder %s23, 3
      %p55 = por %p53, %p54
      %p56 = scmp.ne.s32.totalorder %s45, %s46
      %p57 = scmp.eq.s32.totalorder %s23, 0
      %p58 = por %p56, %p57
      %p59 = scmp.ne.s32.totalorder %s45, %s46
      %p60 = scmp.eq.s32.totalorder %s24, 3
      %p61 = por %p59, %p60
      %p63 = scmp.ne.s32.totalorder %s46, %s62
      %p64 = scmp.eq.s32.totalorder %s24, 0
      %p65 = por %p63, %p64
      %s66 = ssub.s32 %s25, %s37
      %s67 = ssub.s32 %s26, %s33
      %s68 = sor.u32 %s66, %s67
      %p69 = scmp.eq.s32.totalorder %s68, 0
      %s71 = sadd.s32 %s70, 1
      %s72 = scalar_select %p69, %s70, %s71
      %p75 = pneg %p69
      %p76 = scmp.eq.s32.totalorder %s18, 3
      %p77 = por %p75, %p76
      %p78 = scmp.ne.s32.totalorder %s70, %s73
      %p79 = scmp.eq.s32.totalorder %s18, 0
      %p80 = por %p78, %p79
      %p81 = scmp.ne.s32.totalorder %s70, %s73
      %p82 = scmp.eq.s32.totalorder %s23, 3
      %p83 = por %p81, %p82
      %p84 = scmp.ne.s32.totalorder %s73, %s74
      %p85 = scmp.eq.s32.totalorder %s23, 0
      %p86 = por %p84, %p85
      %p87 = scmp.ne.s32.totalorder %s73, %s74
      %p88 = scmp.eq.s32.totalorder %s24, 3
      %p89 = por %p87, %p88
      %p91 = scmp.ne.s32.totalorder %s74, %s90
      %p92 = scmp.eq.s32.totalorder %s24, 0
      %p93 = por %p91, %p92
      %s94 = ssub.s32 %s25, %s37
      %s95 = ssub.s32 %s26, %s33
      %s96 = sor.u32 %s94, %s95
      %p97 = scmp.eq.s32.totalorder %s96, 0
      %s99 = sadd.s32 %s98, 1
      %s100 = scalar_select %p97, %s98, %s99
      %p103 = pneg %p97
      %p104 = scmp.eq.s32.totalorder %s18, 3
      %p105 = por %p103, %p104
      %p106 = scmp.ne.s32.totalorder %s98, %s101
      %p107 = scmp.eq.s32.totalorder %s18, 0
      %p108 = por %p106, %p107
      %p109 = scmp.ne.s32.totalorder %s98, %s101
      %p110 = scmp.eq.s32.totalorder %s23, 3
      %p111 = por %p109, %p110
      %p112 = scmp.ne.s32.totalorder %s101, %s102
      %p113 = scmp.eq.s32.totalorder %s23, 0
      %p114 = por %p112, %p113
      %p115 = scmp.ne.s32.totalorder %s101, %s102
      %p116 = scmp.eq.s32.totalorder %s24, 3
      %p117 = por %p115, %p116
      %p119 = scmp.ne.s32.totalorder %s102, %s118
      %p120 = scmp.eq.s32.totalorder %s24, 0
      %p121 = por %p119, %p120
      %s123 = sadd.s32 %s122, 1
      %p126 = scmp.eq.s32.totalorder %s18, 3
      %p127 = scmp.ne.s32.totalorder %s122, %s124
      %p128 = scmp.eq.s32.totalorder %s18, 0
      %p129 = por %p127, %p128
      %p130 = scmp.ne.s32.totalorder %s122, %s124
      %p131 = scmp.eq.s32.totalorder %s23, 3
      %p132 = por %p130, %p131
      %p133 = scmp.ne.s32.totalorder %s124, %s125
      %p134 = scmp.eq.s32.totalorder %s23, 0
      %p135 = por %p133, %p134
      %p136 = scmp.ne.s32.totalorder %s124, %s125
      %p137 = scmp.eq.s32.totalorder %s24, 3
      %p138 = por %p136, %p137
      %p140 = scmp.ne.s32.totalorder %s125, %s139
      %p141 = scmp.eq.s32.totalorder %s24, 0
      %p142 = por %p140, %p141
      %s143 = ssub.s32 %s25, %s37
      %s144 = ssub.s32 %s26, %s33
      %s145 = sor.u32 %s143, %s144
      %p146 = scmp.eq.s32.totalorder %s145, 0
      %s148 = sadd.s32 %s147, 1
      %s149 = scalar_select %p146, %s147, %s148
      %p152 = pneg %p146
      %p153 = scmp.eq.s32.totalorder %s18, 3
      %p154 = por %p152, %p153
      %p155 = scmp.ne.s32.totalorder %s147, %s150
      %p156 = scmp.eq.s32.totalorder %s18, 0
      %p157 = por %p155, %p156
      %p158 = scmp.ne.s32.totalorder %s147, %s150
      %p159 = scmp.eq.s32.totalorder %s23, 3
      %p160 = por %p158, %p159
      %p161 = scmp.ne.s32.totalorder %s150, %s151
      %p162 = scmp.eq.s32.totalorder %s23, 0
      %p163 = por %p161, %p162
      %p164 = scmp.ne.s32.totalorder %s150, %s151
      %p165 = scmp.eq.s32.totalorder %s24, 3
      %p166 = por %p164, %p165
      %p168 = scmp.ne.s32.totalorder %s151, %s167
      %p169 = scmp.eq.s32.totalorder %s24, 0
      %p170 = por %p168, %p169
      %s171 = ssub.s32 %s25, %s37
      %s172 = ssub.s32 %s26, %s33
      %s173 = sor.u32 %s171, %s172
      %p174 = scmp.eq.s32.totalorder %s173, 0
      %s176 = sadd.s32 %s175, 1
      %s177 = scalar_select %p174, %s175, %s176
      %p180 = pneg %p174
      %p181 = scmp.eq.s32.totalorder %s18, 3
      %p182 = por %p180, %p181
      %p183 = scmp.ne.s32.totalorder %s175, %s178
      %p184 = scmp.eq.s32.totalorder %s18, 0
      %p185 = por %p183, %p184
      %p186 = scmp.ne.s32.totalorder %s175, %s178
      %p187 = scmp.eq.s32.totalorder %s23, 3
      %p188 = por %p186, %p187
      %p189 = scmp.ne.s32.totalorder %s178, %s179
      %p190 = scmp.eq.s32.totalorder %s23, 0
      %p191 = por %p189, %p190
      %p192 = scmp.ne.s32.totalorder %s178, %s179
      %p193 = scmp.eq.s32.totalorder %s24, 3
      %p194 = por %p192, %p193
      %p196 = scmp.ne.s32.totalorder %s179, %s195
      %p197 = scmp.eq.s32.totalorder %s24, 0
      %p198 = por %p196, %p197
      %p199 = scmp.le.s32.totalorder 1, %s18
      %p200 = scmp.lt.s32.totalorder %s18, 5
      %p201 = pnand %p199, %p200
      %p202 = pneg %p201
      // Predicated region
      $region9: #{tpu_custom_call.1} parent=5 // pred_check
        _
      $region10: #{tpu_custom_call.1} parent=5 // pred_check_branch
        %204 = sbr.rel (%p201) target = $region12
      $region11: #{tpu_custom_call.1} parent=5 // pred_region
        %s205 = ssub.s32 %s18, 1
        // Predicated region
        $region13: #{tpu_custom_call.1} parent=11 // pred_check
          %p206 = pneg %p135
        $region14: #{tpu_custom_call.1} parent=11 // pred_check_branch
          %208 = sbr.rel (%p206) target = $region16
        $region15: #{tpu_custom_call.1} parent=11 // pred_region
          _
        $region16: #{tpu_custom_call.1} parent=11 // pred_fallthru
          _
      $region12: #{tpu_custom_call.1} parent=5 // pred_fallthru
        _
      %p209 = scmp.lt.s32.totalorder %s18, 4
      // Predicated region
      $region17: #{tpu_custom_call.1} parent=5 // pred_check
        %p210 = pneg %p209
      $region18: #{tpu_custom_call.1} parent=5 // pred_check_branch
        %212 = sbr.rel (%p210) target = $region20
      $region19: #{tpu_custom_call.1} parent=5 // pred_region
        // Predicated region
        $region21: #{tpu_custom_call.1} parent=19 // pred_check
          %p213 = pneg %p52
        $region22: #{tpu_custom_call.1} parent=19 // pred_check_branch
          %215 = sbr.rel (%p213) target = $region24
        $region23: #{tpu_custom_call.1} parent=19 // pred_region
          %p216 = scmp.lt.s32.totalorder %s25, 1
          %s217 = scalar_select %p216, %s25, 1
          %p218 = scmp.lt.s32.totalorder %s26, 1
          %s219 = scalar_select %p218, %s26, 1
          %s220 = smul.addr %s217, 2
          %s221 = sadd.s32 %s219, %s220
          %s222 = smul.addr %s221, 4
          %s223 = scalar_lea.vmem %s0, %s222
        $region24: #{tpu_custom_call.1} parent=19 // pred_fallthru
          _
        // Predicated region
        $region25: #{tpu_custom_call.1} parent=19 // pred_check
          %p224 = pneg %p80
        $region26: #{tpu_custom_call.1} parent=19 // pred_check_branch
          %226 = sbr.rel (%p224) target = $region28
        $region27: #{tpu_custom_call.1} parent=19 // pred_region
          %p227 = scmp.lt.s32.totalorder %s25, 1
          %s228 = scalar_select %p227, %s25, 1
          %p229 = scmp.lt.s32.totalorder %s26, 1
          %s230 = scalar_select %p229, %s26, 1
          %s231 = smul.addr %s228, 2
          %s232 = sadd.s32 %s230, %s231
          %s233 = smul.addr %s232, 2
          %s234 = scalar_lea.vmem %s1, %s233
        $region28: #{tpu_custom_call.1} parent=19 // pred_fallthru
          _
        // Predicated region
        $region29: #{tpu_custom_call.1} parent=19 // pred_check
          %p235 = pneg %p108
        $region30: #{tpu_custom_call.1} parent=19 // pred_check_branch
          %237 = sbr.rel (%p235) target = $region32
        $region31: #{tpu_custom_call.1} parent=19 // pred_region
          %p238 = scmp.lt.s32.totalorder %s25, 1
          %s239 = scalar_select %p238, %s25, 1
          %p240 = scmp.lt.s32.totalorder %s26, 1
          %s241 = scalar_select %p240, %s26, 1
          %s242 = smul.addr %s241, 2
          %s243 = smul.addr %s239, 4
          %s244 = sadd.s32 %s242, %s243
          %s245 = smul.addr %s244, 8
          %s246 = scalar_lea.vmem %s2, %s245
        $region32: #{tpu_custom_call.1} parent=19 // pred_fallthru
          _
      $region20: #{tpu_custom_call.1} parent=5 // pred_fallthru
        _
      %p247 = scmp.le.s32.totalorder 1, %s18
      %p248 = scmp.lt.s32.totalorder %s18, 5
      %p249 = pnand %p247, %p248
      %p250 = pneg %p249
      // Predicated region
      $region33: #{tpu_custom_call.1} parent=5 // pred_check
        _
      $region34: #{tpu_custom_call.1} parent=5 // pred_check_branch
        %252 = sbr.rel (%p249) target = $region36
      $region35: #{tpu_custom_call.1} parent=5 // pred_region
        %s253 = ssub.s32 %s18, 1
        %p254 = scmp.lt.s32.totalorder %s27, 1
        %s255 = scalar_select %p254, %s27, 1
        %p256 = scmp.lt.s32.totalorder %s28, 1
        %s257 = scalar_select %p256, %s28, 1
        %s258 = smul.addr %s255, 2
        %s259 = sadd.s32 %s257, %s258
        %s260 = smul.addr %s259, 4
        %s261 = scalar_lea.vmem %s0, %s260
        %p262 = pneg %p58
        %p263 = pneg %p55
        %p264 = scmp.lt.s32.totalorder %s27, 1
        %s265 = scalar_select %p264, %s27, 1
        %p266 = scmp.lt.s32.totalorder %s28, 1
        %s267 = scalar_select %p266, %s28, 1
        %s268 = smul.addr %s265, 2
        %s269 = sadd.s32 %s267, %s268
        %s270 = smul.addr %s269, 2
        %s271 = scalar_lea.vmem %s1, %s270
        %p272 = pneg %p86
        %p273 = pneg %p83
        %p274 = scmp.lt.s32.totalorder %s27, 1
        %s275 = scalar_select %p274, %s27, 1
        %p276 = scmp.lt.s32.totalorder %s28, 1
        %s277 = scalar_select %p276, %s28, 1
        %s278 = smul.addr %s277, 2
        %s279 = smul.addr %s275, 4
        %s280 = sadd.s32 %s278, %s279
        %s281 = smul.addr %s280, 8
        %s282 = scalar_lea.vmem %s2, %s281
        %p283 = pneg %p114
        %p284 = pneg %p111
        %p285 = pneg %p135
        %p286 = pneg %p132
        %p287 = pneg %p163
        %p288 = pneg %p160
        %s289 = sand.u32 %s150, 1
        %s290 = scalar_lea.sflag [#allocation5], %s289
        %s291 = sand.u32 %s150, 1
        %s292 = smul.addr %s291, 4
        %s293 = scalar_lea.vmem [#allocation4], %s292
        %p294 = pneg %p191
        %p295 = pneg %p188
        %s296 = sand.u32 %s178, 1
        %s297 = scalar_lea.sflag [#allocation7], %s296
        %s298 = sand.u32 %s178, 1
        %s299 = scalar_lea.vmem [#allocation6], %s298
        %p300 = scmp.lt.s32.totalorder %s27, 1
        %s301 = scalar_select %p300, %s27, 1
        %p302 = scmp.lt.s32.totalorder %s28, 1
        %s303 = scalar_select %p302, %s28, 1
        %s304 = smul.addr %s301, 2
        %s305 = sadd.s32 %s303, %s304
        %s306 = smul.addr %s305, 4
        %s307 = scalar_lea.vmem %s0, %s306
        %p308 = scmp.lt.s32.totalorder %s27, 1
        %s309 = scalar_select %p308, %s27, 1
        %p310 = scmp.lt.s32.totalorder %s28, 1
        %s311 = scalar_select %p310, %s28, 1
        %s312 = smul.addr %s309, 2
        %s313 = sadd.s32 %s311, %s312
        %s314 = smul.addr %s313, 2
        %s315 = scalar_lea.vmem %s1, %s314
        %p316 = scmp.lt.s32.totalorder %s27, 1
        %s317 = scalar_select %p316, %s27, 1
        %p318 = scmp.lt.s32.totalorder %s28, 1
        %s319 = scalar_select %p318, %s28, 1
        %s320 = smul.addr %s319, 2
        %s321 = smul.addr %s317, 4
        %s322 = sadd.s32 %s320, %s321
        %s323 = smul.addr %s322, 8
        %s324 = scalar_lea.vmem %s2, %s323
        %v326 = vld [vmem:[%s324] sm:$0xff]
        %v327 = vld [vmem:[%s324 + $0x8] sm:$0xf]
        %vm328 = vcmask 911360
        %329 = vst.msk [vmem:[#allocation2] sm:$0x7] %vm328, 0
        %vm330 = vcmask 1042560
        %331 = vst.msk [vmem:[#allocation2 + $0x8] sm:$0x7] %vm330, 0
        %v332 = vpack.c.bf16 %v326, %v326
        %v334 = vunpack.c.l.b16 %v332
        %v335 = vpack.c.b16 %v334, %v334
        %336 = vrot.lane.b32.xlu0 %v335, 112
        %v337 = vpop.permute.xlu0 %336
        %vm339 = vcmask 1043328
        %340 = vst.msk [vmem:[#allocation2] sm:$0x7] %vm339, %v337
        %v341 = vld [vmem:[%s307] sm:$0xf]
        %v342 = vpack.c.bf16 %v341, %v341
        %343 = vst [vmem:[#allocation2 + $0x4] sm:$0x3] %v342
        %v344 = vld [vmem:[%s315] sm:$0x3]
        %v345 = vpack.c.bf16 %v344, %v344
        %v347 = vunpack.c.l.b16 %v345
        %v348 = vpack.c.b16 %v347, %v347
        %v349 = vrot.slane %v348, 6
        %351 = vst [vmem:[#allocation2 + $0x4] sm:$0x4] %v349
        %v352 = vpack.c.bf16 %v327, %v326
        %v354 = vunpack.c.l.b16 %v352
        %v355 = vunpack.c.h.b16 %v352
        %v356 = vpack.c.b16 %v354, %v354
        %v357 = vpack.c.b16 %v355, %v355
        %vm358 = vcmask 1040384
        %vm359 = vcmask 1044484
        %vm360 = vmor %vm358, %vm359
        %v361 = vrot.slane %v356, 7
        %v362 = vrot.slane %v361, 4
        %v363 = vrot.slane %v357, 7
        %v364 = vsel %vm360, %v362, %v363
        %vm366 = vcmask 124928
        %367 = vst.msk [vmem:[#allocation2 + $0x8] sm:$0x7] %vm366, %v364
        %v368 = vlaneseq
        %vm369 = vcmp.ge.s32.totalorder %v368, 0
        %vm370 = vcmp.lt.s32.totalorder %v368, 112
        %vm371 = vmand %vm369, %vm370
        %372 = vst.msk [vmem:[#allocation3] sm:$0x1] %vm371, -inf
        %vm373 = vcmp.ge.s32.totalorder %v368, 16
        %vm374 = vcmp.lt.s32.totalorder %v368, 128
        %vm375 = vmand %vm373, %vm374
        %376 = vst.msk [vmem:[#allocation3 + $0x2] sm:$0x1] %vm375, -inf
        %v378 = vcombine.high %v326, %v326
        %v380 = vunpack.c.l.s4 1966171168
        %v381 = vunpack.c.0.s8 %v380
        %v382 = vlaneseq
        %v383 = vshrl.u32 %v382, 7
        %v384 = vsub.s32 %v381, %v383
        %v385 = vrot.slane %v378, %v384
        %v387 = vunpack.c.l.s4 1966171168
        %v388 = vunpack.c.0.s8 %v387
        %v389 = vlaneseq
        %v390 = vshrl.u32 %v389, 7
        %v391 = vsub.s32 %v388, %v390
        %v392 = vrot.slane %v385, %v391
        %393 = vrot.lane.b32.xlu0 %v392, 112
        %v394 = vpop.permute.xlu0 %393
        %vm396 = vcmp.ge.s32.totalorder %v368, 112
        %vm397 = vmand %vm396, %vm374
        %398 = vst.msk [vmem:[#allocation3] sm:$0x1] %vm397, %v394
        %v399 = vld [vmem:[%s315] sm:$0x1]
        %vm400 = vmand %vm369, %vm374
        %401 = vst.msk [vmem:[#allocation3 + $0x1] sm:$0x1] %vm400, %v399
        %v404 = vunpack.c.l.s4 1966171168
        %v405 = vunpack.c.0.s8 %v404
        %v406 = vlaneseq
        %v407 = vshrl.u32 %v406, 7
        %v408 = vsub.s32 %v405, %v407
        %v409 = vrot.slane %v327, %v408
        %v411 = vunpack.c.l.s4 1966171168
        %v412 = vunpack.c.0.s8 %v411
        %v413 = vlaneseq
        %v414 = vshrl.u32 %v413, 7
        %v415 = vsub.s32 %v412, %v414
        %v416 = vrot.slane %v409, %v415
        %v417 = vcombine.high %v416, %v416
        %vm419 = vcmp.lt.s32.totalorder %v368, 16
        %vm420 = vmand %vm369, %vm419
        %421 = vst.msk [vmem:[#allocation3 + $0x2] sm:$0x1] %vm420, %v417
        %p422 = scmp.eq.s32.totalorder %s28, 0
        // Predicated region
        $region37: #{tpu_custom_call.1} parent=35 // pred_check
          %p423 = pneg %p422
        $region38: #{tpu_custom_call.1} parent=35 // pred_check_branch
          %425 = sbr.rel (%p423) target = $region40
        $region39: #{tpu_custom_call.1} parent=35 // pred_region
          %426 = vst.msk [vmem:[#allocation3] sm:$0x1] %vm397, -inf
        $region40: #{tpu_custom_call.1} parent=35 // pred_fallthru
          _
        %p427 = scmp.eq.s32.totalorder %s28, 1
        // Predicated region
        $region41: #{tpu_custom_call.1} parent=35 // pred_check
          %p428 = pneg %p427
        $region42: #{tpu_custom_call.1} parent=35 // pred_check_branch
          %430 = sbr.rel (%p428) target = $region44
        $region43: #{tpu_custom_call.1} parent=35 // pred_region
          %431 = vst.msk [vmem:[#allocation3 + $0x2] sm:$0x1] %vm420, -inf
        $region44: #{tpu_custom_call.1} parent=35 // pred_fallthru
          _
        %v432 = vlaneseq
        %v433 = vand.u32 %v432, 127
        %v434 = vadd.s32 %v433, 128
        %vm435 = vcmp.lt.s32.totalorder %v433, 0
        %v436 = vsub.s32 0, %v433
        %v437 = vsel %vm435, %v436, %v433
        %v438 = vshrl.u32 %v437, 4
        %v439 = vand.u32 %v437, 15
        %v440 = vsub.s32 0, %v439
        %v441 = vsel %vm435, %v440, %v439
        %vm442 = vcmp.lt.s32.totalorder %v434, 0
        %v443 = vsub.s32 0, %v434
        %v444 = vsel %vm442, %v443, %v434
        %v445 = vshrl.u32 %v444, 4
        %v446 = vand.u32 %v444, 15
        %v447 = vsub.s32 0, %v446
        %v448 = vsel %vm442, %v447, %v446
        %vm449 = vcmp.ne.s32.totalorder %v441, 0
        %vm450 = vcmp.ne.s32.totalorder %v448, 0
        %vm451 = vcmp.lt.s32.totalorder %v441, 0
        %vm452 = vcmp.lt.s32.totalorder %v448, 0
        %vm453 = vmand %vm451, %vm449
        %vm454 = vmand %vm452, %vm450
        %v455 = vadd.s32 %v441, 16
        %v456 = vadd.s32 %v448, 16
        %v457 = vsel %vm453, %v455, %v441
        %v458 = vsel %vm454, %v456, %v448
        %v459 = vld [vmem:[#allocation3] sm:$0x7]
        %vm460 = vcmp.eq.s32.totalorder %v457, 0
        %vm461 = vcmp.eq.s32.totalorder %v458, 0
        %v463 = vlaneseq
        %v464 = vshrl.u32 %v463, 7
        %v465 = vsub.s32 0, %v464
        %v466 = vrot.slane %v459, %v465
        %v467 = vlaneseq
        %v468 = vshrl.u32 %v467, 7
        %v469 = vsub.s32 1, %v468
        %v470 = vrot.slane %v459, %v469
        %v471 = vlaneseq
        %v472 = vshrl.u32 %v471, 7
        %v473 = vsub.s32 2, %v472
        %v474 = vrot.slane %v459, %v473
        %475 = vrot.lane.b32.xlu0 %v466, 17
        %v476 = vpop.permute.xlu0 %475
        %477 = vrot.lane.b32.xlu0 %v470, 17
        %v478 = vpop.permute.xlu0 %477
        %479 = vrot.lane.b32.xlu0 %v474, 17
        %v480 = vpop.permute.xlu0 %479
        %vm481 = vcmask 138240
        %v482 = vsel %vm481, %v476, %v478
        %v483 = vsel %vm481, %v478, %v480
        %v486 = vsel %vm460, -inf, %v482
        %v487 = vsel %vm461, -inf, %v483
        %vm488 = vcmp.eq.s32.totalorder %v457, 15
        %vm489 = vcmp.eq.s32.totalorder %v458, 15
        %490 = vrot.lane.b32.xlu0 %v466, 15
        %v491 = vpop.permute.xlu0 %490
        %492 = vrot.lane.b32.xlu0 %v470, 15
        %v493 = vpop.permute.xlu0 %492
        %494 = vrot.lane.b32.xlu0 %v474, 15
        %v495 = vpop.permute.xlu0 %494
        %vm496 = vcmask 121856
        %v497 = vsel %vm496, %v491, %v493
        %v498 = vsel %vm496, %v493, %v495
        %v501 = vsel %vm488, -inf, %v497
        %v502 = vsel %vm489, -inf, %v498
        %v503 = vmax.f32 %v486, %v501
        %v504 = vmax.f32 %v487, %v502
        %v507 = vcombine.low %v503, %v504
        %v509 = vunpack.c.l.s4 1966171168
        %v510 = vunpack.c.0.s8 %v509
        %v511 = vlaneseq
        %v512 = vshrl.u32 %v511, 7
        %v513 = vsub.s32 %v510, %v512
        %v514 = vrot.slane %v507, %v513
        %v516 = vunpack.c.l.s4 1966171168
        %v517 = vunpack.c.0.s8 %v516
        %v518 = vlaneseq
        %v519 = vshrl.u32 %v518, 7
        %v520 = vsub.s32 %v517, %v519
        %v521 = vrot.slane %v514, %v520
        %522 = vrot.lane.b32.xlu0 %v521, 112
        %v523 = vpop.permute.xlu0 %522
        %v524 = vrot.slane %v523, 7
        %vm525 = vcmask 916480
        %v526 = vsel %vm525, %v524, %v523
        %v528 = vmax.f32 %v459, %v526
        %v530 = vrot.slane %v528, 1
        %532 = vrot.lane.b32.xlu0 %v528, 112
        %v533 = vpop.permute.xlu0 %532
        %v534 = vrot.slane %v533, 1
        %v535 = vrot.slane %v533, 2
        %v536 = vsel %vm525, %v534, %v535
        %v538 = vmax.f32 %v530, %v536
        %540 = vrot.lane.b32.xlu0 %v538, 112
        %v541 = vpop.permute.xlu0 %540
        %v542 = vrot.slane %v541, 7
        %v543 = vsel %vm525, %v542, %v541
        %v545 = vmax.f32 %v528, %v543
        %vm546 = vcmp.ne.s32.totalorder %v457, 0
        %v547 = vsel %vm546, 1, 0
        %v548 = vcvt.s32.f32 %v547
        %vm549 = vcmp.ne.s32.totalorder %v457, 15
        %v550 = vsel %vm549, 1, 0
        %v551 = vcvt.s32.f32 %v550
        %v552 = vld [vmem:[#allocation2] sm:$0x77]
        %v553 = vld [vmem:[%s3] sm:$0x3]
        %s554 = scalar_lea.vmem %s3, 2
        %v555 = vld [vmem:[%s554] sm:$0x3]
        %s556 = scalar_lea.vmem %s3, 4
        %v557 = vld [vmem:[%s556] sm:$0x3]
        %s558 = scalar_lea.vmem %s3, 6
        %v559 = vld [vmem:[%s558] sm:$0x3]
        %v561 = vunpack.c.l.b16 %v552
        %v562 = vunpack.c.h.b16 %v552
        %v563 = vpack.c.b16 %v561, %v561
        %v564 = vpack.c.b16 %v562, %v562
        %565 = vrot.lane.b32.xlu0 %v563, 1
        %v566 = vpop.permute.xlu0 %565
        %567 = vrot.lane.b32.xlu0 %v564, 1
        %v568 = vpop.permute.xlu0 %567
        %vm569 = vcmask 7168
        %v570 = vsel %vm569, %v566, %v568
        %vm571 = vcmask 48128
        %v573 = vsel %vm571, %v559, 0
        %vm575 = vcmask 1042432
        %v577 = vsel %vm575, %v570, 0
        %579 = vmatprep.subr.bf16.mxu0 0
        %580 = vmatpush1.bf16.msra.mxu0 0
        %581 = vmatprep.subr.bf16.mxu0 0
        %582 = vmatpush1.bf16.msra.mxu0 0
        %583 = vmatprep.subr.bf16.mxu0 0
        %584 = vmatpush1.bf16.msra.mxu0 0
        %585 = vmatprep.subr.bf16.mxu0 0
        %586 = vmatpush1.bf16.msra.mxu0 0
        %587 = vmatprep.subr.bf16.mxu0 0
        %588 = vmatpush1.bf16.msra.mxu0 0
        %589 = vmatprep.subr.bf16.mxu0 0
        %590 = vmatpush1.bf16.msra.mxu0 0
        %591 = vmatprep.subr.bf16.mxu0 0
        %592 = vmatpush1.bf16.msra.mxu0 0
        %593 = vmatprep.subr.bf16.mxu0 0
        %594 = vmatpush1.bf16.msra.mxu0 %v577
        %595 = vmatprep.subr.bf16.mxu0 0
        %596 = vmatpush2.bf16.msra.mxu0 0
        %597 = vmatprep.subr.bf16.mxu0 0
        %598 = vmatpush2.bf16.msra.mxu0 0
        %599 = vmatprep.subr.bf16.mxu0 0
        %600 = vmatpush2.bf16.msra.mxu0 0
        %601 = vmatprep.subr.bf16.mxu0 0
        %602 = vmatpush2.bf16.msra.mxu0 0
        %603 = vmatprep.subr.bf16.mxu0 0
        %604 = vmatpush2.bf16.msra.mxu0 0
        %605 = vmatprep.subr.bf16.mxu0 0
        %606 = vmatpush2.bf16.msra.mxu0 0
        %607 = vmatprep.subr.bf16.mxu0 0
        %608 = vmatpush2.bf16.msra.mxu0 0
        %609 = vmatprep.subr.bf16.mxu0 0
        %610 = vmatpush2.bf16.msra.mxu0 0
        %611 = vmatprep.mubr.bf16.mxu0 0
        %612 = vmatmul.mubr.bf16.gmra.mxu0 %v573
        %v613 = vpop.f32.mrf.mxu0
        %v614 = vadd.f32 0.0, %v613
        %v615 = vpop.f32.mrf.mxu0
        %v616 = vpop.f32.mrf.mxu0
        %v617 = vpop.f32.mrf.mxu0
        %618 = vdwg.mxu0
        %619 = vrot.lane.b32.xlu0 %v563, 17
        %v620 = vpop.permute.xlu0 %619
        %621 = vrot.lane.b32.xlu0 %v564, 17
        %v622 = vpop.permute.xlu0 %621
        %vm623 = vcmask 138240
        %v624 = vsel %vm623, %v620, %v622
        %v626 = vsel %vm571, %v553, 0
        %v629 = vsel %vm575, %v624, 0
        %631 = vmatprep.subr.bf16.mxu0 0
        %632 = vmatpush1.bf16.msra.mxu0 0
        %633 = vmatprep.subr.bf16.mxu0 0
        %634 = vmatpush1.bf16.msra.mxu0 0
        %635 = vmatprep.subr.bf16.mxu0 0
        %636 = vmatpush1.bf16.msra.mxu0 0
        %637 = vmatprep.subr.bf16.mxu0 0
        %638 = vmatpush1.bf16.msra.mxu0 0
        %639 = vmatprep.subr.bf16.mxu0 0
        %640 = vmatpush1.bf16.msra.mxu0 0
        %641 = vmatprep.subr.bf16.mxu0 0
        %642 = vmatpush1.bf16.msra.mxu0 0
        %643 = vmatprep.subr.bf16.mxu0 0
        %644 = vmatpush1.bf16.msra.mxu0 0
        %645 = vmatprep.subr.bf16.mxu0 0
        %646 = vmatpush1.bf16.msra.mxu0 %v629
        %647 = vmatprep.subr.bf16.mxu0 0
        %648 = vmatpush2.bf16.msra.mxu0 0
        %649 = vmatprep.subr.bf16.mxu0 0
        %650 = vmatpush2.bf16.msra.mxu0 0
        %651 = vmatprep.subr.bf16.mxu0 0
        %652 = vmatpush2.bf16.msra.mxu0 0
        %653 = vmatprep.subr.bf16.mxu0 0
        %654 = vmatpush2.bf16.msra.mxu0 0
        %655 = vmatprep.subr.bf16.mxu0 0
        %656 = vmatpush2.bf16.msra.mxu0 0
        %657 = vmatprep.subr.bf16.mxu0 0
        %658 = vmatpush2.bf16.msra.mxu0 0
        %659 = vmatprep.subr.bf16.mxu0 0
        %660 = vmatpush2.bf16.msra.mxu0 0
        %661 = vmatprep.subr.bf16.mxu0 0
        %662 = vmatpush2.bf16.msra.mxu0 0
        %663 = vmatprep.mubr.bf16.mxu0 0
        %664 = vmatmul.mubr.bf16.gmra.mxu0 %v626
        %v665 = vpop.f32.mrf.mxu0
        %v666 = vadd.f32 %v614, %v665
        %v667 = vpop.f32.mrf.mxu0
        %v668 = vpop.f32.mrf.mxu0
        %v669 = vpop.f32.mrf.mxu0
        %670 = vdwg.mxu0
        %v671 = vld [vmem:[#allocation2 + $0x4] sm:$0x7]
        %s672 = scalar_lea.vmem %s3, 8
        %v673 = vld [vmem:[%s672] sm:$0x3]
        %v675 = vsel %vm571, %v673, 0
        %v678 = vsel %vm575, %v671, 0
        %680 = vmatprep.subr.bf16.mxu0 0
        %681 = vmatpush1.bf16.msra.mxu0 0
        %682 = vmatprep.subr.bf16.mxu0 0
        %683 = vmatpush1.bf16.msra.mxu0 0
        %684 = vmatprep.subr.bf16.mxu0 0
        %685 = vmatpush1.bf16.msra.mxu0 0
        %686 = vmatprep.subr.bf16.mxu0 0
        %687 = vmatpush1.bf16.msra.mxu0 0
        %688 = vmatprep.subr.bf16.mxu0 0
        %689 = vmatpush1.bf16.msra.mxu0 0
        %690 = vmatprep.subr.bf16.mxu0 0
        %691 = vmatpush1.bf16.msra.mxu0 0
        %692 = vmatprep.subr.bf16.mxu0 0
        %693 = vmatpush1.bf16.msra.mxu0 0
        %694 = vmatprep.subr.bf16.mxu0 0
        %695 = vmatpush1.bf16.msra.mxu0 %v678
        %696 = vmatprep.subr.bf16.mxu0 0
        %697 = vmatpush2.bf16.msra.mxu0 0
        %698 = vmatprep.subr.bf16.mxu0 0
        %699 = vmatpush2.bf16.msra.mxu0 0
        %700 = vmatprep.subr.bf16.mxu0 0
        %701 = vmatpush2.bf16.msra.mxu0 0
        %702 = vmatprep.subr.bf16.mxu0 0
        %703 = vmatpush2.bf16.msra.mxu0 0
        %704 = vmatprep.subr.bf16.mxu0 0
        %705 = vmatpush2.bf16.msra.mxu0 0
        %706 = vmatprep.subr.bf16.mxu0 0
        %707 = vmatpush2.bf16.msra.mxu0 0
        %708 = vmatprep.subr.bf16.mxu0 0
        %709 = vmatpush2.bf16.msra.mxu0 0
        %710 = vmatprep.subr.bf16.mxu0 0
        %711 = vmatpush2.bf16.msra.mxu0 0
        %712 = vmatprep.mubr.bf16.mxu0 0
        %713 = vmatmul.mubr.bf16.gmra.mxu0 %v675
        %v714 = vpop.f32.mrf.mxu0
        %v715 = vadd.f32 0.0, %v714
        %v716 = vpop.f32.mrf.mxu0
        %v717 = vpop.f32.mrf.mxu0
        %v718 = vpop.f32.mrf.mxu0
        %719 = vdwg.mxu0
        %720 = vrot.lane.b32.xlu0 %v563, 16
        %v721 = vpop.permute.xlu0 %720
        %722 = vrot.lane.b32.xlu0 %v564, 16
        %v723 = vpop.permute.xlu0 %722
        %vm724 = vcmask 130048
        %v725 = vsel %vm724, %v721, %v723
        %v727 = vsel %vm571, %v555, 0
        %v730 = vsel %vm575, %v725, 0
        %732 = vmatprep.subr.bf16.mxu0 0
        %733 = vmatpush1.bf16.msra.mxu0 0
        %734 = vmatprep.subr.bf16.mxu0 0
        %735 = vmatpush1.bf16.msra.mxu0 0
        %736 = vmatprep.subr.bf16.mxu0 0
        %737 = vmatpush1.bf16.msra.mxu0 0
        %738 = vmatprep.subr.bf16.mxu0 0
        %739 = vmatpush1.bf16.msra.mxu0 0
        %740 = vmatprep.subr.bf16.mxu0 0
        %741 = vmatpush1.bf16.msra.mxu0 0
        %742 = vmatprep.subr.bf16.mxu0 0
        %743 = vmatpush1.bf16.msra.mxu0 0
        %744 = vmatprep.subr.bf16.mxu0 0
        %745 = vmatpush1.bf16.msra.mxu0 0
        %746 = vmatprep.subr.bf16.mxu0 0
        %747 = vmatpush1.bf16.msra.mxu0 %v730
        %748 = vmatprep.subr.bf16.mxu0 0
        %749 = vmatpush2.bf16.msra.mxu0 0
        %750 = vmatprep.subr.bf16.mxu0 0
        %751 = vmatpush2.bf16.msra.mxu0 0
        %752 = vmatprep.subr.bf16.mxu0 0
        %753 = vmatpush2.bf16.msra.mxu0 0
        %754 = vmatprep.subr.bf16.mxu0 0
        %755 = vmatpush2.bf16.msra.mxu0 0
        %756 = vmatprep.subr.bf16.mxu0 0
        %757 = vmatpush2.bf16.msra.mxu0 0
        %758 = vmatprep.subr.bf16.mxu0 0
        %759 = vmatpush2.bf16.msra.mxu0 0
        %760 = vmatprep.subr.bf16.mxu0 0
        %761 = vmatpush2.bf16.msra.mxu0 0
        %762 = vmatprep.subr.bf16.mxu0 0
        %763 = vmatpush2.bf16.msra.mxu0 0
        %764 = vmatprep.mubr.bf16.mxu0 0
        %765 = vmatmul.mubr.bf16.gmra.mxu0 %v727
        %v766 = vpop.f32.mrf.mxu0
        %v767 = vadd.f32 %v715, %v766
        %v768 = vpop.f32.mrf.mxu0
        %v769 = vpop.f32.mrf.mxu0
        %v770 = vpop.f32.mrf.mxu0
        %771 = vdwg.mxu0
        %v772 = vld [vmem:[#allocation2 + $0x4] sm:$0x77]
        %s773 = scalar_lea.vmem %s3, 10
        %v774 = vld [vmem:[%s773] sm:$0x3]
        %v776 = vunpack.c.l.b16 %v772
        %v777 = vunpack.c.h.b16 %v772
        %v778 = vpack.c.b16 %v776, %v776
        %v779 = vpack.c.b16 %v777, %v777
        %780 = vrot.lane.b32.xlu0 %v778, 127
        %v781 = vpop.permute.xlu0 %780
        %782 = vrot.lane.b32.xlu0 %v779, 127
        %v783 = vpop.permute.xlu0 %782
        %vm784 = vcmask 1039360
        %v785 = vsel %vm784, %v781, %v783
        %v787 = vsel %vm571, %v774, 0
        %v790 = vsel %vm575, %v785, 0
        %792 = vmatprep.subr.bf16.mxu0 0
        %793 = vmatpush1.bf16.msra.mxu0 0
        %794 = vmatprep.subr.bf16.mxu0 0
        %795 = vmatpush1.bf16.msra.mxu0 0
        %796 = vmatprep.subr.bf16.mxu0 0
        %797 = vmatpush1.bf16.msra.mxu0 0
        %798 = vmatprep.subr.bf16.mxu0 0
        %799 = vmatpush1.bf16.msra.mxu0 0
        %800 = vmatprep.subr.bf16.mxu0 0
        %801 = vmatpush1.bf16.msra.mxu0 0
        %802 = vmatprep.subr.bf16.mxu0 0
        %803 = vmatpush1.bf16.msra.mxu0 0
        %804 = vmatprep.subr.bf16.mxu0 0
        %805 = vmatpush1.bf16.msra.mxu0 0
        %806 = vmatprep.subr.bf16.mxu0 0
        %807 = vmatpush1.bf16.msra.mxu0 %v790
        %808 = vmatprep.subr.bf16.mxu0 0
        %809 = vmatpush2.bf16.msra.mxu0 0
        %810 = vmatprep.subr.bf16.mxu0 0
        %811 = vmatpush2.bf16.msra.mxu0 0
        %812 = vmatprep.subr.bf16.mxu0 0
        %813 = vmatpush2.bf16.msra.mxu0 0
        %814 = vmatprep.subr.bf16.mxu0 0
        %815 = vmatpush2.bf16.msra.mxu0 0
        %816 = vmatprep.subr.bf16.mxu0 0
        %817 = vmatpush2.bf16.msra.mxu0 0
        %818 = vmatprep.subr.bf16.mxu0 0
        %819 = vmatpush2.bf16.msra.mxu0 0
        %820 = vmatprep.subr.bf16.mxu0 0
        %821 = vmatpush2.bf16.msra.mxu0 0
        %822 = vmatprep.subr.bf16.mxu0 0
        %823 = vmatpush2.bf16.msra.mxu0 0
        %824 = vmatprep.mubr.bf16.mxu0 0
        %825 = vmatmul.mubr.bf16.gmra.mxu0 %v787
        %v826 = vpop.f32.mrf.mxu0
        %v827 = vadd.f32 0.0, %v826
        %v828 = vpop.f32.mrf.mxu0
        %v829 = vpop.f32.mrf.mxu0
        %v830 = vpop.f32.mrf.mxu0
        %831 = vdwg.mxu0
        %832 = vrot.lane.b32.xlu0 %v563, 15
        %v833 = vpop.permute.xlu0 %832
        %834 = vrot.lane.b32.xlu0 %v564, 15
        %v835 = vpop.permute.xlu0 %834
        %vm836 = vcmask 121856
        %v837 = vsel %vm836, %v833, %v835
        %v839 = vsel %vm571, %v557, 0
        %v842 = vsel %vm575, %v837, 0
        %844 = vmatprep.subr.bf16.mxu0 0
        %845 = vmatpush1.bf16.msra.mxu0 0
        %846 = vmatprep.subr.bf16.mxu0 0
        %847 = vmatpush1.bf16.msra.mxu0 0
        %848 = vmatprep.subr.bf16.mxu0 0
        %849 = vmatpush1.bf16.msra.mxu0 0
        %850 = vmatprep.subr.bf16.mxu0 0
        %851 = vmatpush1.bf16.msra.mxu0 0
        %852 = vmatprep.subr.bf16.mxu0 0
        %853 = vmatpush1.bf16.msra.mxu0 0
        %854 = vmatprep.subr.bf16.mxu0 0
        %855 = vmatpush1.bf16.msra.mxu0 0
        %856 = vmatprep.subr.bf16.mxu0 0
        %857 = vmatpush1.bf16.msra.mxu0 0
        %858 = vmatprep.subr.bf16.mxu0 0
        %859 = vmatpush1.bf16.msra.mxu0 %v842
        %860 = vmatprep.subr.bf16.mxu0 0
        %861 = vmatpush2.bf16.msra.mxu0 0
        %862 = vmatprep.subr.bf16.mxu0 0
        %863 = vmatpush2.bf16.msra.mxu0 0
        %864 = vmatprep.subr.bf16.mxu0 0
        %865 = vmatpush2.bf16.msra.mxu0 0
        %866 = vmatprep.subr.bf16.mxu0 0
        %867 = vmatpush2.bf16.msra.mxu0 0
        %868 = vmatprep.subr.bf16.mxu0 0
        %869 = vmatpush2.bf16.msra.mxu0 0
        %870 = vmatprep.subr.bf16.mxu0 0
        %871 = vmatpush2.bf16.msra.mxu0 0
        %872 = vmatprep.subr.bf16.mxu0 0
        %873 = vmatpush2.bf16.msra.mxu0 0
        %874 = vmatprep.subr.bf16.mxu0 0
        %875 = vmatpush2.bf16.msra.mxu0 0
        %876 = vmatprep.mubr.bf16.mxu0 0
        %877 = vmatmul.mubr.bf16.gmra.mxu0 %v839
        %v878 = vpop.f32.mrf.mxu0
        %v879 = vadd.f32 %v827, %v878
        %v880 = vpop.f32.mrf.mxu0
        %v881 = vpop.f32.mrf.mxu0
        %v882 = vpop.f32.mrf.mxu0
        %883 = vdwg.mxu0
        %s884 = scalar_lea.vmem %s3, 12
        %v885 = vld [vmem:[%s884] sm:$0x3]
        %886 = vrot.lane.b32.xlu0 %v778, 113
        %v887 = vpop.permute.xlu0 %886
        %888 = vrot.lane.b32.xlu0 %v779, 113
        %v889 = vpop.permute.xlu0 %888
        %vm890 = vcmask 924672
        %v891 = vsel %vm890, %v887, %v889
        %v893 = vsel %vm571, %v885, 0
        %v896 = vsel %vm575, %v891, 0
        %898 = vmatprep.subr.bf16.mxu0 0
        %899 = vmatpush1.bf16.msra.mxu0 0
        %900 = vmatprep.subr.bf16.mxu0 0
        %901 = vmatpush1.bf16.msra.mxu0 0
        %902 = vmatprep.subr.bf16.mxu0 0
        %903 = vmatpush1.bf16.msra.mxu0 0
        %904 = vmatprep.subr.bf16.mxu0 0
        %905 = vmatpush1.bf16.msra.mxu0 0
        %906 = vmatprep.subr.bf16.mxu0 0
        %907 = vmatpush1.bf16.msra.mxu0 0
        %908 = vmatprep.subr.bf16.mxu0 0
        %909 = vmatpush1.bf16.msra.mxu0 0
        %910 = vmatprep.subr.bf16.mxu0 0
        %911 = vmatpush1.bf16.msra.mxu0 0
        %912 = vmatprep.subr.bf16.mxu0 0
        %913 = vmatpush1.bf16.msra.mxu0 %v896
        %914 = vmatprep.subr.bf16.mxu0 0
        %915 = vmatpush2.bf16.msra.mxu0 0
        %916 = vmatprep.subr.bf16.mxu0 0
        %917 = vmatpush2.bf16.msra.mxu0 0
        %918 = vmatprep.subr.bf16.mxu0 0
        %919 = vmatpush2.bf16.msra.mxu0 0
        %920 = vmatprep.subr.bf16.mxu0 0
        %921 = vmatpush2.bf16.msra.mxu0 0
        %922 = vmatprep.subr.bf16.mxu0 0
        %923 = vmatpush2.bf16.msra.mxu0 0
        %924 = vmatprep.subr.bf16.mxu0 0
        %925 = vmatpush2.bf16.msra.mxu0 0
        %926 = vmatprep.subr.bf16.mxu0 0
        %927 = vmatpush2.bf16.msra.mxu0 0
        %928 = vmatprep.subr.bf16.mxu0 0
        %929 = vmatpush2.bf16.msra.mxu0 0
        %930 = vmatprep.mubr.bf16.mxu0 0
        %931 = vmatmul.mubr.bf16.gmra.mxu0 %v893
        %v932 = vpop.f32.mrf.mxu0
        %v933 = vadd.f32 0.0, %v932
        %v934 = vpop.f32.mrf.mxu0
        %v935 = vpop.f32.mrf.mxu0
        %v936 = vpop.f32.mrf.mxu0
        %937 = vdwg.mxu0
        %v938 = vadd.f32 %v666, %v933
        %s939 = scalar_lea.vmem %s3, 14
        %v940 = vld [vmem:[%s939] sm:$0x3]
        %941 = vrot.lane.b32.xlu0 %v778, 112
        %v942 = vpop.permute.xlu0 %941
        %943 = vrot.lane.b32.xlu0 %v779, 112
        %v944 = vpop.permute.xlu0 %943
        %vm945 = vcmask 916480
        %v946 = vsel %vm945, %v942, %v944
        %v948 = vsel %vm571, %v940, 0
        %v951 = vsel %vm575, %v946, 0
        %953 = vmatprep.subr.bf16.mxu0 0
        %954 = vmatpush1.bf16.msra.mxu0 0
        %955 = vmatprep.subr.bf16.mxu0 0
        %956 = vmatpush1.bf16.msra.mxu0 0
        %957 = vmatprep.subr.bf16.mxu0 0
        %958 = vmatpush1.bf16.msra.mxu0 0
        %959 = vmatprep.subr.bf16.mxu0 0
        %960 = vmatpush1.bf16.msra.mxu0 0
        %961 = vmatprep.subr.bf16.mxu0 0
        %962 = vmatpush1.bf16.msra.mxu0 0
        %963 = vmatprep.subr.bf16.mxu0 0
        %964 = vmatpush1.bf16.msra.mxu0 0
        %965 = vmatprep.subr.bf16.mxu0 0
        %966 = vmatpush1.bf16.msra.mxu0 0
        %967 = vmatprep.subr.bf16.mxu0 0
        %968 = vmatpush1.bf16.msra.mxu0 %v951
        %969 = vmatprep.subr.bf16.mxu0 0
        %970 = vmatpush2.bf16.msra.mxu0 0
        %971 = vmatprep.subr.bf16.mxu0 0
        %972 = vmatpush2.bf16.msra.mxu0 0
        %973 = vmatprep.subr.bf16.mxu0 0
        %974 = vmatpush2.bf16.msra.mxu0 0
        %975 = vmatprep.subr.bf16.mxu0 0
        %976 = vmatpush2.bf16.msra.mxu0 0
        %977 = vmatprep.subr.bf16.mxu0 0
        %978 = vmatpush2.bf16.msra.mxu0 0
        %979 = vmatprep.subr.bf16.mxu0 0
        %980 = vmatpush2.bf16.msra.mxu0 0
        %981 = vmatprep.subr.bf16.mxu0 0
        %982 = vmatpush2.bf16.msra.mxu0 0
        %983 = vmatprep.subr.bf16.mxu0 0
        %984 = vmatpush2.bf16.msra.mxu0 0
        %985 = vmatprep.mubr.bf16.mxu0 0
        %986 = vmatmul.mubr.bf16.gmra.mxu0 %v948
        %v987 = vpop.f32.mrf.mxu0
        %v988 = vadd.f32 0.0, %v987
        %v989 = vpop.f32.mrf.mxu0
        %v990 = vpop.f32.mrf.mxu0
        %v991 = vpop.f32.mrf.mxu0
        %992 = vdwg.mxu0
        %v993 = vadd.f32 %v767, %v988
        %s994 = scalar_lea.vmem %s3, 16
        %v995 = vld [vmem:[%s994] sm:$0x3]
        %996 = vrot.lane.b32.xlu0 %v778, 111
        %v997 = vpop.permute.xlu0 %996
        %998 = vrot.lane.b32.xlu0 %v779, 111
        %v999 = vpop.permute.xlu0 %998
        %vm1000 = vcmask 908288
        %v1001 = vsel %vm1000, %v997, %v999
        %v1003 = vsel %vm571, %v995, 0
        %v1006 = vsel %vm575, %v1001, 0
        %1008 = vmatprep.subr.bf16.mxu0 0
        %1009 = vmatpush1.bf16.msra.mxu0 0
        %1010 = vmatprep.subr.bf16.mxu0 0
        %1011 = vmatpush1.bf16.msra.mxu0 0
        %1012 = vmatprep.subr.bf16.mxu0 0
        %1013 = vmatpush1.bf16.msra.mxu0 0
        %1014 = vmatprep.subr.bf16.mxu0 0
        %1015 = vmatpush1.bf16.msra.mxu0 0
        %1016 = vmatprep.subr.bf16.mxu0 0
        %1017 = vmatpush1.bf16.msra.mxu0 0
        %1018 = vmatprep.subr.bf16.mxu0 0
        %1019 = vmatpush1.bf16.msra.mxu0 0
        %1020 = vmatprep.subr.bf16.mxu0 0
        %1021 = vmatpush1.bf16.msra.mxu0 0
        %1022 = vmatprep.subr.bf16.mxu0 0
        %1023 = vmatpush1.bf16.msra.mxu0 %v1006
        %1024 = vmatprep.subr.bf16.mxu0 0
        %1025 = vmatpush2.bf16.msra.mxu0 0
        %1026 = vmatprep.subr.bf16.mxu0 0
        %1027 = vmatpush2.bf16.msra.mxu0 0
        %1028 = vmatprep.subr.bf16.mxu0 0
        %1029 = vmatpush2.bf16.msra.mxu0 0
        %1030 = vmatprep.subr.bf16.mxu0 0
        %1031 = vmatpush2.bf16.msra.mxu0 0
        %1032 = vmatprep.subr.bf16.mxu0 0
        %1033 = vmatpush2.bf16.msra.mxu0 0
        %1034 = vmatprep.subr.bf16.mxu0 0
        %1035 = vmatpush2.bf16.msra.mxu0 0
        %1036 = vmatprep.subr.bf16.mxu0 0
        %1037 = vmatpush2.bf16.msra.mxu0 0
        %1038 = vmatprep.subr.bf16.mxu0 0
        %1039 = vmatpush2.bf16.msra.mxu0 0
        %1040 = vmatprep.mubr.bf16.mxu0 0
        %1041 = vmatmul.mubr.bf16.gmra.mxu0 %v1003
        %v1042 = vpop.f32.mrf.mxu0
        %v1043 = vadd.f32 0.0, %v1042
        %v1044 = vpop.f32.mrf.mxu0
        %v1045 = vpop.f32.mrf.mxu0
        %v1046 = vpop.f32.mrf.mxu0
        %1047 = vdwg.mxu0
        %v1048 = vadd.f32 %v879, %v1043
        %v1049 = vmul.f32 %v548, %v938
        %v1050 = vadd.f32 %v993, %v1049
        %v1051 = vmul.f32 %v551, %v1048
        %v1052 = vadd.f32 %v1050, %v1051
        %v1054 = vlaneseq
        %v1055 = vshrl.u32 %v1054, 7
        %v1056 = vsub.s32 0, %v1055
        %v1057 = vrot.slane %v545, %v1056
        %v1058 = vlaneseq
        %v1059 = vshrl.u32 %v1058, 7
        %v1060 = vsub.s32 1, %v1059
        %v1061 = vrot.slane %v545, %v1060
        %1062 = vrot.lane.b32.xlu0 %v1057, 16
        %v1063 = vpop.permute.xlu0 %1062
        %1064 = vrot.lane.b32.xlu0 %v1061, 16
        %v1065 = vpop.permute.xlu0 %1064
        %vm1066 = vcmask 130048
        %v1067 = vsel %vm1066, %v1063, %v1065
        %v1069 = vmul.f32 %v1052, %v1067
        %v1070 = vmax.f32 %v1069, 0.0
        %1071 = vst [vmem:[%s293] sm:$0xf] %v1070
        %1072 = vst [vmem:[%s299] sm:$0x1] %v1067
        %s1073 = sand.u32 %s150, 1
        %s1074 = scalar_lea.sflag [#allocation5], %s1073
        %s1075 = sand.u32 %s150, 1
        %s1076 = smul.addr %s1075, 4
        %s1077 = scalar_lea.vmem [#allocation4], %s1076
        %s1078 = sand.u32 %s178, 1
        %s1079 = scalar_lea.sflag [#allocation7], %s1078
        %s1080 = sand.u32 %s178, 1
        %s1081 = scalar_lea.vmem [#allocation6], %s1080
        // Predicated region
        $region45: #{tpu_custom_call.1} parent=35 // pred_check
          %p1082 = pneg %p160
        $region46: #{tpu_custom_call.1} parent=35 // pred_check_branch
          %1084 = sbr.rel (%p1082) target = $region48
        $region47: #{tpu_custom_call.1} parent=35 // pred_region
          %s1086 = ssub.s32 64, 64
          %1087 = vsyncadd %s1074, %s1086
          %s1088 = smul.addr %s27, 2
          %s1089 = sadd.s32 %s28, %s1088
          %s1090 = smul.addr %s1089, 64
          %s1091 = scalar_lea.hbm %s4, %s1090
          %s1093 = sshll.u32 %s1077, 4
          %s1094 = int_to_ptr.vmem [resolvable:$true] %s1093
          %1096 = dma.vmem_to_hbm [thread:$0]  %s1094, 64, %s1091, %s1074
        $region48: #{tpu_custom_call.1} parent=35 // pred_fallthru
          _
        // Predicated region
        $region49: #{tpu_custom_call.1} parent=35 // pred_check
          %p1097 = pneg %p188
        $region50: #{tpu_custom_call.1} parent=35 // pred_check_branch
          %1099 = sbr.rel (%p1097) target = $region52
        $region51: #{tpu_custom_call.1} parent=35 // pred_region
          %s1101 = ssub.s32 16, 16
          %1102 = vsyncadd %s1079, %s1101
          %s1103 = smul.addr %s27, 2
          %s1104 = sadd.s32 %s28, %s1103
          %s1105 = smul.addr %s1104, 16
          %s1106 = scalar_lea.hbm %s5, %s1105
          %s1108 = sshll.u32 %s1081, 4
          %s1109 = int_to_ptr.vmem [resolvable:$true] %s1108
          %1111 = dma.vmem_to_hbm [thread:$0]  %s1109, 16, %s1106, %s1079
        $region52: #{tpu_custom_call.1} parent=35 // pred_fallthru
          _
      $region36: #{tpu_custom_call.1} parent=5 // pred_fallthru
        _
      %p1112 = scmp.le.s32.totalorder 2, %s18
      // Predicated region
      $region53: #{tpu_custom_call.1} parent=5 // pred_check
        %p1113 = pneg %p1112
      $region54: #{tpu_custom_call.1} parent=5 // pred_check_branch
        %1115 = sbr.rel (%p1113) target = $region56
      $region55: #{tpu_custom_call.1} parent=5 // pred_region
        %s1116 = ssub.s32 %s18, 2
        // Predicated region
        $region57: #{tpu_custom_call.1} parent=55 // pred_check
          %p1117 = pneg %p166
        $region58: #{tpu_custom_call.1} parent=55 // pred_check_branch
          %1119 = sbr.rel (%p1117) target = $region60
        $region59: #{tpu_custom_call.1} parent=55 // pred_region
          %s1120 = sand.u32 %s151, 1
          %s1121 = scalar_lea.sflag [#allocation5], %s1120
          %s1122 = sand.u32 %s151, 1
          %s1123 = smul.addr %s1122, 4
          %s1124 = scalar_lea.vmem [#allocation4], %s1123
          %1125 = dma.done %s1121, 64
        $region60: #{tpu_custom_call.1} parent=55 // pred_fallthru
          _
        // Predicated region
        $region61: #{tpu_custom_call.1} parent=55 // pred_check
          %p1126 = pneg %p194
        $region62: #{tpu_custom_call.1} parent=55 // pred_check_branch
          %1128 = sbr.rel (%p1126) target = $region64
        $region63: #{tpu_custom_call.1} parent=55 // pred_region
          %s1129 = sand.u32 %s179, 1
          %s1130 = scalar_lea.sflag [#allocation7], %s1129
          %s1131 = sand.u32 %s179, 1
          %s1132 = scalar_lea.vmem [#allocation6], %s1131
          %1133 = dma.done %s1130, 16
        $region64: #{tpu_custom_call.1} parent=55 // pred_fallthru
          _
      $region56: #{tpu_custom_call.1} parent=5 // pred_fallthru
        _
    $region6: #{tpu_custom_call.1} parent=1 // loop_footer
      %s22 = sadd.s32 1, %s18
    $region7: #{tpu_custom_call.1} parent=1 // loop_footer_branch
      %17 = sbr.rel target = $region3
    $region8: #{tpu_custom_call.1} parent=1 // loop_exit
      _
    %1134 = vsyncpa [#allocation5], 1
    %s1135 = scalar_lea.sflag [#allocation5], 1
    %1136 = vsyncpa %s1135, 1
    %1137 = vsyncpa [#allocation7], 1
    %s1138 = scalar_lea.sflag [#allocation7], 1
    %1139 = vsyncpa %s1138, 1

</llo_original>
